<compile_context>
chip_gen: v5e
topology: v5e:2x2
jax: 0.10.0
libtpu: 0.0.40
codegen_flags: <defaults>
</compile_context>

<pallas_src>
import math

import jax
import jax.numpy as jnp
from jax.experimental import pallas as pl
from jax.experimental.pallas import tpu as pltpu

# ----- synthetic "bert-base-uncased"-style config (shrunk) ------------------
VOCAB = 100
HIDDEN = 32
LAYERS = 2
HEADS = 2
DH = HIDDEN // HEADS
INTER = 64
MAX_POS = 16
TYPE_VOCAB = 2
LN_EPS = 1e-12
NUM_CLASSES = 2


# ----------------------------- fused Pallas kernel ---------------------------
def make_fused_kernel(B, S):
    H = HIDDEN
    scale = 1.0 / math.sqrt(DH)

    def kernel(emb_ref, mask_ref, eg_ref, eb_ref,
               wqkv_ref, bqkv_ref, wo_ref, bo_ref,
               l1g_ref, l1b_ref, wi_ref, bi_ref, wf_ref, bf_ref,
               l2g_ref, l2b_ref, pw_ref, pb_ref, fw_ref, fb_ref,
               o_ref, ctx_ref):
        f32 = jnp.float32

        def layernorm(x, g, b):
            mu = jnp.mean(x, axis=-1, keepdims=True)
            var = jnp.mean((x - mu) ** 2, axis=-1, keepdims=True)
            return (x - mu) * jax.lax.rsqrt(var + LN_EPS) * g + b

        # Embedding LayerNorm (dropout is identity in eval mode).
        x = layernorm(emb_ref[...], eg_ref[...], eb_ref[...])          # (B*S, H)

        # Encoder layers, fully unrolled (LAYERS=2), weights stacked per layer.
        for l in range(LAYERS):
            # Fused QKV projection: one (B*S, H) @ (H, 3H) matmul.
            qkv = jnp.dot(x, wqkv_ref[l],
                          preferred_element_type=f32) + bqkv_ref[l]    # (B*S, 3H)

            # Attention: static per-(batch, head) loops, head split in-kernel,
            # additive mask broadcast in-kernel (f32 throughout).
            for b in range(B):
                r0 = b * S
                m = mask_ref[b:b + 1, :]                               # (1, S)
                for h in range(HEADS):
                    q = qkv[r0:r0 + S, h * DH:(h + 1) * DH]            # (S, DH)
                    k = qkv[r0:r0 + S, H + h * DH:H + (h + 1) * DH]
                    v = qkv[r0:r0 + S, 2 * H + h * DH:2 * H + (h + 1) * DH]
                    s = jnp.einsum("qd,kd->qk", q, k,
                                   preferred_element_type=f32) * scale + m
                    s = s - jnp.max(s, axis=-1, keepdims=True)
                    p = jnp.exp(s)
                    p = p * pl.reciprocal(jnp.sum(p, axis=-1, keepdims=True),
                                          approx=True)
                    ctx_ref[r0:r0 + S, h * DH:(h + 1) * DH] = jnp.dot(
                        p, v, preferred_element_type=f32)

            # Attention output projection + residual + LN1.
            attn = jnp.dot(ctx_ref[...], wo_ref[l],
                           preferred_element_type=f32) + bo_ref[l]
            x = layernorm(attn + x, l1g_ref[l], l1b_ref[l])

            # FFN: GELU intermediate + output projection + residual + LN2.
            # TODO(synk): HF BERT uses exact erf-GELU; tanh-approx used here.
            inter = jax.nn.gelu(
                jnp.dot(x, wi_ref[l], preferred_element_type=f32) + bi_ref[l],
                approximate=True)
            ffn = jnp.dot(inter, wf_ref[l],
                          preferred_element_type=f32) + bf_ref[l]
            x = layernorm(ffn + x, l2g_ref[l], l2b_ref[l])

        # Pooler (dense + tanh) and classifier, fused.  Computed over all rows
        # (same MXU pass cost at these shapes); only the CLS rows are stored.
        # nn.Dropout(0.3) is identity in eval / inference mode.
        pooled = jnp.tanh(jnp.dot(x, pw_ref[...],
                                  preferred_element_type=f32) + pb_ref[...])
        logits = jnp.dot(pooled, fw_ref[...],
                         preferred_element_type=f32) + fb_ref[...]     # (B*S, C)
        for b in range(B):
            o_ref[b:b + 1, :] = logits[b * S:b * S + 1, :]

    return kernel


# ------------------------------ forward wrapper -------------------------------
def forward(params, input_ids, attention_mask):
    B, S = input_ids.shape
    H = HIDDEN

    # Embedding gather + sum stays in XLA (gather glue); everything else fused.
    emb = (params["word_emb"][input_ids]
           + params["pos_emb"][:S][None, :, :]
           + params["type_emb"][0][None, None, :]).astype(jnp.float32)
    emb = emb.reshape(B * S, H)

    # HF-style additive attention mask, kept as (B, S); broadcast in-kernel.
    mask_add = (1.0 - attention_mask.astype(jnp.float32)) * -1e9        # (B, S)

    args = (emb, mask_add,
            params["emb_ln_g"], params["emb_ln_b"],
            params["wqkv"], params["bqkv"], params["wo"], params["bo"],
            params["ln1_g"], params["ln1_b"],
            params["wi"], params["bi"], params["wf"], params["bf"],
            params["ln2_g"], params["ln2_b"],
            params["pool_w"], params["pool_b"],
            params["fc_w"], params["fc_b"])

    return pl.pallas_call(
        make_fused_kernel(B, S),
        out_shape=jax.ShapeDtypeStruct((B, NUM_CLASSES), jnp.float32),
        in_specs=[pl.BlockSpec(memory_space=pltpu.MemorySpace.VMEM)
                  for _ in args],
        out_specs=pl.BlockSpec(memory_space=pltpu.MemorySpace.VMEM),
        scratch_shapes=[pltpu.VMEM((B * S, H), jnp.float32)],   # attention ctx
    )(*args)


# ------------------------------ parameters -----------------------------------
def init_params(key):
    ks = jax.random.split(key, 15)

    def w(k, shape):
        return jax.random.normal(k, shape, jnp.float32) * 0.02

    return {
        "word_emb": w(ks[0], (VOCAB, HIDDEN)),
        "pos_emb": w(ks[1], (MAX_POS, HIDDEN)),
        "type_emb": w(ks[2], (TYPE_VOCAB, HIDDEN)),
        "emb_ln_g": jnp.ones((1, HIDDEN), jnp.float32),
        "emb_ln_b": jnp.zeros((1, HIDDEN), jnp.float32),
        # per-layer weights stacked along a leading LAYERS axis; Q|K|V fused.
        "wqkv": w(ks[3], (LAYERS, HIDDEN, 3 * HIDDEN)),
        "bqkv": w(ks[4], (LAYERS, 1, 3 * HIDDEN)),
        "wo": w(ks[5], (LAYERS, HIDDEN, HIDDEN)),
        "bo": w(ks[6], (LAYERS, 1, HIDDEN)),
        "ln1_g": jnp.ones((LAYERS, 1, HIDDEN), jnp.float32),
        "ln1_b": jnp.zeros((LAYERS, 1, HIDDEN), jnp.float32),
        "wi": w(ks[7], (LAYERS, HIDDEN, INTER)),
        "bi": w(ks[8], (LAYERS, 1, INTER)),
        "wf": w(ks[9], (LAYERS, INTER, HIDDEN)),
        "bf": w(ks[10], (LAYERS, 1, HIDDEN)),
        "ln2_g": jnp.ones((LAYERS, 1, HIDDEN), jnp.float32),
        "ln2_b": jnp.zeros((LAYERS, 1, HIDDEN), jnp.float32),
        "pool_w": w(ks[11], (HIDDEN, HIDDEN)),
        "pool_b": w(ks[12], (1, HIDDEN)),
        "fc_w": w(ks[13], (HIDDEN, NUM_CLASSES)),
        "fc_b": w(ks[14], (1, NUM_CLASSES)),
    }


# --------------------------- pure-JAX reference -------------------------------
def ref_forward(params, input_ids, attention_mask):
    B, S = input_ids.shape
    H = HIDDEN

    def ln(x, g, b):
        mu = x.mean(-1, keepdims=True)
        var = ((x - mu) ** 2).mean(-1, keepdims=True)
        return (x - mu) * jax.lax.rsqrt(var + LN_EPS) * g + b

    x = ln(params["word_emb"][input_ids] + params["pos_emb"][:S][None]
           + params["type_emb"][0][None, None],
           params["emb_ln_g"], params["emb_ln_b"])
    mask_add = (1.0 - attention_mask.astype(jnp.float32)) * -1e9
    for l in range(LAYERS):
        qkv = x @ params["wqkv"][l] + params["bqkv"][l]          # (B, S, 3H)
        q = qkv[..., :H].reshape(B, S, HEADS, DH).transpose(0, 2, 1, 3)
        k = qkv[..., H:2 * H].reshape(B, S, HEADS, DH).transpose(0, 2, 1, 3)
        v = qkv[..., 2 * H:].reshape(B, S, HEADS, DH).transpose(0, 2, 1, 3)
        s = jnp.einsum("bhqd,bhkd->bhqk", q, k) / math.sqrt(DH)
        s = s + mask_add[:, None, None, :]
        a = jax.nn.softmax(s, axis=-1)
        ctx = jnp.einsum("bhqk,bhkd->bhqd", a, v).transpose(0, 2, 1, 3)
        ctx = ctx.reshape(B, S, H)
        x = ln(ctx @ params["wo"][l] + params["bo"][l] + x,
               params["ln1_g"][l], params["ln1_b"][l])
        inter = jax.nn.gelu(x @ params["wi"][l] + params["bi"][l],
                            approximate=True)
        x = ln(inter @ params["wf"][l] + params["bf"][l] + x,
               params["ln2_g"][l], params["ln2_b"][l])
    pooled = jnp.tanh(x[:, 0] @ params["pool_w"] + params["pool_b"])
    return pooled @ params["fc_w"] + params["fc_b"]


# ----------------------------------- main -------------------------------------
if __name__ == "__main__":
    key = jax.random.PRNGKey(0)
    pkey, ikey = jax.random.split(key)
    params = init_params(pkey)

    B, S = 2, 8
    input_ids = jax.random.randint(ikey, (B, S), 0, VOCAB, dtype=jnp.int32)
    attention_mask = jnp.array([[1, 1, 1, 1, 1, 1, 1, 1],
                                [1, 1, 1, 1, 1, 0, 0, 0]], dtype=jnp.int32)

    logits = jax.jit(forward)(params, input_ids, attention_mask)
    logits = jax.block_until_ready(logits)

    with jax.default_matmul_precision("highest"):
        ref = ref_forward(params, input_ids, attention_mask)

    assert logits.shape == (B, NUM_CLASSES)
    assert jnp.allclose(logits, ref, atol=2e-3, rtol=2e-3), (logits, ref)

    print("KERNEL_OK")
</pallas_src>

<mosaic_0001>
module attributes {stable_mosaic.version = 11 : i64} {
  func.func @kernel(%arg0: memref<16x32xf32, #tpu.memory_space<vmem>>, %arg1: memref<2x8xf32, #tpu.memory_space<vmem>>, %arg2: memref<1x32xf32, #tpu.memory_space<vmem>>, %arg3: memref<1x32xf32, #tpu.memory_space<vmem>>, %arg4: memref<2x32x96xf32, #tpu.memory_space<vmem>>, %arg5: memref<2x1x96xf32, #tpu.memory_space<vmem>>, %arg6: memref<2x32x32xf32, #tpu.memory_space<vmem>>, %arg7: memref<2x1x32xf32, #tpu.memory_space<vmem>>, %arg8: memref<2x1x32xf32, #tpu.memory_space<vmem>>, %arg9: memref<2x1x32xf32, #tpu.memory_space<vmem>>, %arg10: memref<2x32x64xf32, #tpu.memory_space<vmem>>, %arg11: memref<2x1x64xf32, #tpu.memory_space<vmem>>, %arg12: memref<2x64x32xf32, #tpu.memory_space<vmem>>, %arg13: memref<2x1x32xf32, #tpu.memory_space<vmem>>, %arg14: memref<2x1x32xf32, #tpu.memory_space<vmem>>, %arg15: memref<2x1x32xf32, #tpu.memory_space<vmem>>, %arg16: memref<32x32xf32, #tpu.memory_space<vmem>>, %arg17: memref<1x32xf32, #tpu.memory_space<vmem>>, %arg18: memref<32x2xf32, #tpu.memory_space<vmem>>, %arg19: memref<1x2xf32, #tpu.memory_space<vmem>>, %arg20: memref<2x2xf32, #tpu.memory_space<vmem>>, %arg21: memref<16x32xf32, #tpu.memory_space<vmem>>) attributes {dimension_semantics = [], scalar_prefetch = 0 : i64, scratch_operands = 1 : i64, tpu.core_type = #tpu.core_type<tc>} {
    %c0 = arith.constant 0 : index
    %c0_0 = arith.constant 0 : index
    %0 = vector.load %arg0[%c0, %c0_0] : memref<16x32xf32, #tpu.memory_space<vmem>>, vector<16x32xf32>
    %c0_1 = arith.constant 0 : index
    %c0_2 = arith.constant 0 : index
    %1 = vector.load %arg2[%c0_1, %c0_2] : memref<1x32xf32, #tpu.memory_space<vmem>>, vector<1x32xf32>
    %c0_3 = arith.constant 0 : index
    %c0_4 = arith.constant 0 : index
    %2 = vector.load %arg3[%c0_3, %c0_4] : memref<1x32xf32, #tpu.memory_space<vmem>>, vector<1x32xf32>
    %cst = arith.constant dense<0.000000e+00> : vector<16xf32>
    %3 = vector.multi_reduction <add>, %0, %cst [1] : vector<16x32xf32> to vector<16xf32>
    %4 = vector.shape_cast %3 : vector<16xf32> to vector<16x1xf32>
    %cst_5 = arith.constant 3.200000e+01 : f32
    %5 = vector.broadcast %cst_5 : f32 to vector<16x1xf32>
    %6 = arith.divf %4, %5 : vector<16x1xf32>
    %7 = vector.broadcast %6 : vector<16x1xf32> to vector<16x32xf32>
    %8 = arith.subf %0, %7 : vector<16x32xf32>
    %9 = arith.mulf %8, %8 : vector<16x32xf32>
    %cst_6 = arith.constant dense<0.000000e+00> : vector<16xf32>
    %10 = vector.multi_reduction <add>, %9, %cst_6 [1] : vector<16x32xf32> to vector<16xf32>
    %11 = vector.shape_cast %10 : vector<16xf32> to vector<16x1xf32>
    %cst_7 = arith.constant 3.200000e+01 : f32
    %12 = vector.broadcast %cst_7 : f32 to vector<16x1xf32>
    %13 = arith.divf %11, %12 : vector<16x1xf32>
    %14 = vector.broadcast %6 : vector<16x1xf32> to vector<16x32xf32>
    %15 = arith.subf %0, %14 : vector<16x32xf32>
    %cst_8 = arith.constant 9.99999996E-13 : f32
    %16 = vector.broadcast %cst_8 : f32 to vector<16x1xf32>
    %17 = arith.addf %13, %16 : vector<16x1xf32>
    %18 = math.rsqrt %17 : vector<16x1xf32>
    %19 = vector.broadcast %18 : vector<16x1xf32> to vector<16x32xf32>
    %20 = arith.mulf %15, %19 : vector<16x32xf32>
    %21 = vector.broadcast %1 : vector<1x32xf32> to vector<16x32xf32>
    %22 = arith.mulf %20, %21 : vector<16x32xf32>
    %23 = vector.broadcast %2 : vector<1x32xf32> to vector<16x32xf32>
    %24 = arith.addf %22, %23 : vector<16x32xf32>
    %c0_9 = arith.constant 0 : index
    %c0_10 = arith.constant 0 : index
    %c0_11 = arith.constant 0 : index
    %25 = vector.load %arg4[%c0_9, %c0_10, %c0_11] : memref<2x32x96xf32, #tpu.memory_space<vmem>>, vector<1x32x96xf32>
    %26 = vector.shape_cast %25 : vector<1x32x96xf32> to vector<32x96xf32>
    %cst_12 = arith.constant dense<0.000000e+00> : vector<16x96xf32>
    %27 = tpu.matmul %24, %26, %cst_12 {dimension_numbers = #tpu.dot_dimension_numbers<[1], [0], [0], [1], [0, 0, 1, 1], [], []>} : vector<16x32xf32>, vector<32x96xf32>, vector<16x96xf32> -> vector<16x96xf32>
    %c0_13 = arith.constant 0 : index
    %c0_14 = arith.constant 0 : index
    %c0_15 = arith.constant 0 : index
    %28 = vector.load %arg5[%c0_13, %c0_14, %c0_15] : memref<2x1x96xf32, #tpu.memory_space<vmem>>, vector<1x1x96xf32>
    %29 = vector.shape_cast %28 : vector<1x1x96xf32> to vector<1x96xf32>
    %30 = vector.broadcast %29 : vector<1x96xf32> to vector<16x96xf32>
    %31 = arith.addf %27, %30 : vector<16x96xf32>
    %c0_16 = arith.constant 0 : index
    %c0_17 = arith.constant 0 : index
    %32 = vector.load %arg1[%c0_16, %c0_17] : memref<2x8xf32, #tpu.memory_space<vmem>>, vector<1x8xf32>
    %33 = vector.extract_strided_slice %31 {offsets = [0, 0], sizes = [8, 16], strides = [1, 1]} : vector<16x96xf32> to vector<8x16xf32>
    %34 = vector.extract_strided_slice %31 {offsets = [0, 32], sizes = [8, 16], strides = [1, 1]} : vector<16x96xf32> to vector<8x16xf32>
    %35 = vector.extract_strided_slice %31 {offsets = [0, 64], sizes = [8, 16], strides = [1, 1]} : vector<16x96xf32> to vector<8x16xf32>
    "tpu.trace_start"() <{level = 10 : i32, message = "qd,kd->qk"}> : () -> ()
    %cst_18 = arith.constant dense<0.000000e+00> : vector<8x8xf32>
    %36 = tpu.matmul %33, %34, %cst_18 {dimension_numbers = #tpu.dot_dimension_numbers<[1], [1], [0], [0], [0, 0, 1, 0], [], []>} : vector<8x16xf32>, vector<8x16xf32>, vector<8x8xf32> -> vector<8x8xf32>
    "tpu.trace_stop"() : () -> ()
    %cst_19 = arith.constant 2.500000e-01 : f32
    %37 = vector.broadcast %cst_19 : f32 to vector<8x8xf32>
    %38 = arith.mulf %36, %37 : vector<8x8xf32>
    %39 = vector.broadcast %32 : vector<1x8xf32> to vector<8x8xf32>
    %40 = arith.addf %38, %39 : vector<8x8xf32>
    %cst_20 = arith.constant dense<0xFF800000> : vector<8xf32>
    %41 = vector.multi_reduction <maximumf>, %40, %cst_20 [1] : vector<8x8xf32> to vector<8xf32>
    %42 = vector.shape_cast %41 : vector<8xf32> to vector<8x1xf32>
    %43 = vector.broadcast %42 : vector<8x1xf32> to vector<8x8xf32>
    %44 = arith.subf %40, %43 : vector<8x8xf32>
    %45 = math.exp %44 : vector<8x8xf32>
    %cst_21 = arith.constant dense<0.000000e+00> : vector<8xf32>
    %46 = vector.multi_reduction <add>, %45, %cst_21 [1] : vector<8x8xf32> to vector<8xf32>
    %47 = vector.shape_cast %46 : vector<8xf32> to vector<8x1xf32>
    %48 = tpu.reciprocal %47 {approx = true} : vector<8x1xf32> -> vector<8x1xf32>
    %49 = vector.broadcast %48 : vector<8x1xf32> to vector<8x8xf32>
    %50 = arith.mulf %45, %49 : vector<8x8xf32>
    %cst_22 = arith.constant dense<0.000000e+00> : vector<8x16xf32>
    %51 = tpu.matmul %50, %35, %cst_22 {dimension_numbers = #tpu.dot_dimension_numbers<[1], [0], [0], [1], [0, 0, 1, 1], [], []>} : vector<8x8xf32>, vector<8x16xf32>, vector<8x16xf32> -> vector<8x16xf32>
    %c0_23 = arith.constant 0 : index
    %c0_24 = arith.constant 0 : index
    %52 = vector.load %arg21[%c0_23, %c0_24] : memref<16x32xf32, #tpu.memory_space<vmem>>, vector<8x16xf32>
    tpu.vector_store %arg21[%c0_23, %c0_24], %51 {strides = array<i32>} : memref<16x32xf32, #tpu.memory_space<vmem>>, vector<8x16xf32>,
    %53 = vector.extract_strided_slice %31 {offsets = [0, 16], sizes = [8, 16], strides = [1, 1]} : vector<16x96xf32> to vector<8x16xf32>
    %54 = vector.extract_strided_slice %31 {offsets = [0, 48], sizes = [8, 16], strides = [1, 1]} : vector<16x96xf32> to vector<8x16xf32>
    %55 = vector.extract_strided_slice %31 {offsets = [0, 80], sizes = [8, 16], strides = [1, 1]} : vector<16x96xf32> to vector<8x16xf32>
    "tpu.trace_start"() <{level = 10 : i32, message = "qd,kd->qk"}> : () -> ()
    %cst_25 = arith.constant dense<0.000000e+00> : vector<8x8xf32>
    %56 = tpu.matmul %53, %54, %cst_25 {dimension_numbers = #tpu.dot_dimension_numbers<[1], [1], [0], [0], [0, 0, 1, 0], [], []>} : vector<8x16xf32>, vector<8x16xf32>, vector<8x8xf32> -> vector<8x8xf32>
    "tpu.trace_stop"() : () -> ()
    %cst_26 = arith.constant 2.500000e-01 : f32
    %57 = vector.broadcast %cst_26 : f32 to vector<8x8xf32>
    %58 = arith.mulf %56, %57 : vector<8x8xf32>
    %59 = vector.broadcast %32 : vector<1x8xf32> to vector<8x8xf32>
    %60 = arith.addf %58, %59 : vector<8x8xf32>
    %cst_27 = arith.constant dense<0xFF800000> : vector<8xf32>
    %61 = vector.multi_reduction <maximumf>, %60, %cst_27 [1] : vector<8x8xf32> to vector<8xf32>
    %62 = vector.shape_cast %61 : vector<8xf32> to vector<8x1xf32>
    %63 = vector.broadcast %62 : vector<8x1xf32> to vector<8x8xf32>
    %64 = arith.subf %60, %63 : vector<8x8xf32>
    %65 = math.exp %64 : vector<8x8xf32>
    %cst_28 = arith.constant dense<0.000000e+00> : vector<8xf32>
    %66 = vector.multi_reduction <add>, %65, %cst_28 [1] : vector<8x8xf32> to vector<8xf32>
    %67 = vector.shape_cast %66 : vector<8xf32> to vector<8x1xf32>
    %68 = tpu.reciprocal %67 {approx = true} : vector<8x1xf32> -> vector<8x1xf32>
    %69 = vector.broadcast %68 : vector<8x1xf32> to vector<8x8xf32>
    %70 = arith.mulf %65, %69 : vector<8x8xf32>
    %cst_29 = arith.constant dense<0.000000e+00> : vector<8x16xf32>
    %71 = tpu.matmul %70, %55, %cst_29 {dimension_numbers = #tpu.dot_dimension_numbers<[1], [0], [0], [1], [0, 0, 1, 1], [], []>} : vector<8x8xf32>, vector<8x16xf32>, vector<8x16xf32> -> vector<8x16xf32>
    %c0_30 = arith.constant 0 : index
    %c16 = arith.constant 16 : index
    %72 = vector.load %arg21[%c0_30, %c16] : memref<16x32xf32, #tpu.memory_space<vmem>>, vector<8x16xf32>
    tpu.vector_store %arg21[%c0_30, %c16], %71 {strides = array<i32>} : memref<16x32xf32, #tpu.memory_space<vmem>>, vector<8x16xf32>,
    %c1 = arith.constant 1 : index
    %c0_31 = arith.constant 0 : index
    %73 = vector.load %arg1[%c1, %c0_31] : memref<2x8xf32, #tpu.memory_space<vmem>>, vector<1x8xf32>
    %74 = vector.extract_strided_slice %31 {offsets = [8, 0], sizes = [8, 16], strides = [1, 1]} : vector<16x96xf32> to vector<8x16xf32>
    %75 = vector.extract_strided_slice %31 {offsets = [8, 32], sizes = [8, 16], strides = [1, 1]} : vector<16x96xf32> to vector<8x16xf32>
    %76 = vector.extract_strided_slice %31 {offsets = [8, 64], sizes = [8, 16], strides = [1, 1]} : vector<16x96xf32> to vector<8x16xf32>
    "tpu.trace_start"() <{level = 10 : i32, message = "qd,kd->qk"}> : () -> ()
    %cst_32 = arith.constant dense<0.000000e+00> : vector<8x8xf32>
    %77 = tpu.matmul %74, %75, %cst_32 {dimension_numbers = #tpu.dot_dimension_numbers<[1], [1], [0], [0], [0, 0, 1, 0], [], []>} : vector<8x16xf32>, vector<8x16xf32>, vector<8x8xf32> -> vector<8x8xf32>
    "tpu.trace_stop"() : () -> ()
    %cst_33 = arith.constant 2.500000e-01 : f32
    %78 = vector.broadcast %cst_33 : f32 to vector<8x8xf32>
    %79 = arith.mulf %77, %78 : vector<8x8xf32>
    %80 = vector.broadcast %73 : vector<1x8xf32> to vector<8x8xf32>
    %81 = arith.addf %79, %80 : vector<8x8xf32>
    %cst_34 = arith.constant dense<0xFF800000> : vector<8xf32>
    %82 = vector.multi_reduction <maximumf>, %81, %cst_34 [1] : vector<8x8xf32> to vector<8xf32>
    %83 = vector.shape_cast %82 : vector<8xf32> to vector<8x1xf32>
    %84 = vector.broadcast %83 : vector<8x1xf32> to vector<8x8xf32>
    %85 = arith.subf %81, %84 : vector<8x8xf32>
    %86 = math.exp %85 : vector<8x8xf32>
    %cst_35 = arith.constant dense<0.000000e+00> : vector<8xf32>
    %87 = vector.multi_reduction <add>, %86, %cst_35 [1] : vector<8x8xf32> to vector<8xf32>
    %88 = vector.shape_cast %87 : vector<8xf32> to vector<8x1xf32>
    %89 = tpu.reciprocal %88 {approx = true} : vector<8x1xf32> -> vector<8x1xf32>
    %90 = vector.broadcast %89 : vector<8x1xf32> to vector<8x8xf32>
    %91 = arith.mulf %86, %90 : vector<8x8xf32>
    %cst_36 = arith.constant dense<0.000000e+00> : vector<8x16xf32>
    %92 = tpu.matmul %91, %76, %cst_36 {dimension_numbers = #tpu.dot_dimension_numbers<[1], [0], [0], [1], [0, 0, 1, 1], [], []>} : vector<8x8xf32>, vector<8x16xf32>, vector<8x16xf32> -> vector<8x16xf32>
    %c8 = arith.constant 8 : index
    %c0_37 = arith.constant 0 : index
    %93 = vector.load %arg21[%c8, %c0_37] : memref<16x32xf32, #tpu.memory_space<vmem>>, vector<8x16xf32>
    tpu.vector_store %arg21[%c8, %c0_37], %92 {strides = array<i32>} : memref<16x32xf32, #tpu.memory_space<vmem>>, vector<8x16xf32>,
    %94 = vector.extract_strided_slice %31 {offsets = [8, 16], sizes = [8, 16], strides = [1, 1]} : vector<16x96xf32> to vector<8x16xf32>
    %95 = vector.extract_strided_slice %31 {offsets = [8, 48], sizes = [8, 16], strides = [1, 1]} : vector<16x96xf32> to vector<8x16xf32>
    %96 = vector.extract_strided_slice %31 {offsets = [8, 80], sizes = [8, 16], strides = [1, 1]} : vector<16x96xf32> to vector<8x16xf32>
    "tpu.trace_start"() <{level = 10 : i32, message = "qd,kd->qk"}> : () -> ()
    %cst_38 = arith.constant dense<0.000000e+00> : vector<8x8xf32>
    %97 = tpu.matmul %94, %95, %cst_38 {dimension_numbers = #tpu.dot_dimension_numbers<[1], [1], [0], [0], [0, 0, 1, 0], [], []>} : vector<8x16xf32>, vector<8x16xf32>, vector<8x8xf32> -> vector<8x8xf32>
    "tpu.trace_stop"() : () -> ()
    %cst_39 = arith.constant 2.500000e-01 : f32
    %98 = vector.broadcast %cst_39 : f32 to vector<8x8xf32>
    %99 = arith.mulf %97, %98 : vector<8x8xf32>
    %100 = vector.broadcast %73 : vector<1x8xf32> to vector<8x8xf32>
    %101 = arith.addf %99, %100 : vector<8x8xf32>
    %cst_40 = arith.constant dense<0xFF800000> : vector<8xf32>
    %102 = vector.multi_reduction <maximumf>, %101, %cst_40 [1] : vector<8x8xf32> to vector<8xf32>
    %103 = vector.shape_cast %102 : vector<8xf32> to vector<8x1xf32>
    %104 = vector.broadcast %103 : vector<8x1xf32> to vector<8x8xf32>
    %105 = arith.subf %101, %104 : vector<8x8xf32>
    %106 = math.exp %105 : vector<8x8xf32>
    %cst_41 = arith.constant dense<0.000000e+00> : vector<8xf32>
    %107 = vector.multi_reduction <add>, %106, %cst_41 [1] : vector<8x8xf32> to vector<8xf32>
    %108 = vector.shape_cast %107 : vector<8xf32> to vector<8x1xf32>
    %109 = tpu.reciprocal %108 {approx = true} : vector<8x1xf32> -> vector<8x1xf32>
    %110 = vector.broadcast %109 : vector<8x1xf32> to vector<8x8xf32>
    %111 = arith.mulf %106, %110 : vector<8x8xf32>
    %cst_42 = arith.constant dense<0.000000e+00> : vector<8x16xf32>
    %112 = tpu.matmul %111, %96, %cst_42 {dimension_numbers = #tpu.dot_dimension_numbers<[1], [0], [0], [1], [0, 0, 1, 1], [], []>} : vector<8x8xf32>, vector<8x16xf32>, vector<8x16xf32> -> vector<8x16xf32>
    %c8_43 = arith.constant 8 : index
    %c16_44 = arith.constant 16 : index
    %113 = vector.load %arg21[%c8_43, %c16_44] : memref<16x32xf32, #tpu.memory_space<vmem>>, vector<8x16xf32>
    tpu.vector_store %arg21[%c8_43, %c16_44], %112 {strides = array<i32>} : memref<16x32xf32, #tpu.memory_space<vmem>>, vector<8x16xf32>,
    %c0_45 = arith.constant 0 : index
    %c0_46 = arith.constant 0 : index
    %114 = vector.load %arg21[%c0_45, %c0_46] : memref<16x32xf32, #tpu.memory_space<vmem>>, vector<16x32xf32>
    %c0_47 = arith.constant 0 : index
    %c0_48 = arith.constant 0 : index
    %c0_49 = arith.constant 0 : index
    %115 = vector.load %arg6[%c0_47, %c0_48, %c0_49] : memref<2x32x32xf32, #tpu.memory_space<vmem>>, vector<1x32x32xf32>
    %116 = vector.shape_cast %115 : vector<1x32x32xf32> to vector<32x32xf32>
    %cst_50 = arith.constant dense<0.000000e+00> : vector<16x32xf32>
    %117 = tpu.matmul %114, %116, %cst_50 {dimension_numbers = #tpu.dot_dimension_numbers<[1], [0], [0], [1], [0, 0, 1, 1], [], []>} : vector<16x32xf32>, vector<32x32xf32>, vector<16x32xf32> -> vector<16x32xf32>
    %c0_51 = arith.constant 0 : index
    %c0_52 = arith.constant 0 : index
    %c0_53 = arith.constant 0 : index
    %118 = vector.load %arg7[%c0_51, %c0_52, %c0_53] : memref<2x1x32xf32, #tpu.memory_space<vmem>>, vector<1x1x32xf32>
    %119 = vector.shape_cast %118 : vector<1x1x32xf32> to vector<1x32xf32>
    %120 = vector.broadcast %119 : vector<1x32xf32> to vector<16x32xf32>
    %121 = arith.addf %117, %120 : vector<16x32xf32>
    %122 = arith.addf %121, %24 : vector<16x32xf32>
    %c0_54 = arith.constant 0 : index
    %c0_55 = arith.constant 0 : index
    %c0_56 = arith.constant 0 : index
    %123 = vector.load %arg8[%c0_54, %c0_55, %c0_56] : memref<2x1x32xf32, #tpu.memory_space<vmem>>, vector<1x1x32xf32>
    %124 = vector.shape_cast %123 : vector<1x1x32xf32> to vector<1x32xf32>
    %c0_57 = arith.constant 0 : index
    %c0_58 = arith.constant 0 : index
    %c0_59 = arith.constant 0 : index
    %125 = vector.load %arg9[%c0_57, %c0_58, %c0_59] : memref<2x1x32xf32, #tpu.memory_space<vmem>>, vector<1x1x32xf32>
    %126 = vector.shape_cast %125 : vector<1x1x32xf32> to vector<1x32xf32>
    %cst_60 = arith.constant dense<0.000000e+00> : vector<16xf32>
    %127 = vector.multi_reduction <add>, %122, %cst_60 [1] : vector<16x32xf32> to vector<16xf32>
    %128 = vector.shape_cast %127 : vector<16xf32> to vector<16x1xf32>
    %cst_61 = arith.constant 3.200000e+01 : f32
    %129 = vector.broadcast %cst_61 : f32 to vector<16x1xf32>
    %130 = arith.divf %128, %129 : vector<16x1xf32>
    %131 = vector.broadcast %130 : vector<16x1xf32> to vector<16x32xf32>
    %132 = arith.subf %122, %131 : vector<16x32xf32>
    %133 = arith.mulf %132, %132 : vector<16x32xf32>
    %cst_62 = arith.constant dense<0.000000e+00> : vector<16xf32>
    %134 = vector.multi_reduction <add>, %133, %cst_62 [1] : vector<16x32xf32> to vector<16xf32>
    %135 = vector.shape_cast %134 : vector<16xf32> to vector<16x1xf32>
    %cst_63 = arith.constant 3.200000e+01 : f32
    %136 = vector.broadcast %cst_63 : f32 to vector<16x1xf32>
    %137 = arith.divf %135, %136 : vector<16x1xf32>
    %138 = vector.broadcast %130 : vector<16x1xf32> to vector<16x32xf32>
    %139 = arith.subf %122, %138 : vector<16x32xf32>
    %cst_64 = arith.constant 9.99999996E-13 : f32
    %140 = vector.broadcast %cst_64 : f32 to vector<16x1xf32>
    %141 = arith.addf %137, %140 : vector<16x1xf32>
    %142 = math.rsqrt %141 : vector<16x1xf32>
    %143 = vector.broadcast %142 : vector<16x1xf32> to vector<16x32xf32>
    %144 = arith.mulf %139, %143 : vector<16x32xf32>
    %145 = vector.broadcast %124 : vector<1x32xf32> to vector<16x32xf32>
    %146 = arith.mulf %144, %145 : vector<16x32xf32>
    %147 = vector.broadcast %126 : vector<1x32xf32> to vector<16x32xf32>
    %148 = arith.addf %146, %147 : vector<16x32xf32>
    %c0_65 = arith.constant 0 : index
    %c0_66 = arith.constant 0 : index
    %c0_67 = arith.constant 0 : index
    %149 = vector.load %arg10[%c0_65, %c0_66, %c0_67] : memref<2x32x64xf32, #tpu.memory_space<vmem>>, vector<1x32x64xf32>
    %150 = vector.shape_cast %149 : vector<1x32x64xf32> to vector<32x64xf32>
    %cst_68 = arith.constant dense<0.000000e+00> : vector<16x64xf32>
    %151 = tpu.matmul %148, %150, %cst_68 {dimension_numbers = #tpu.dot_dimension_numbers<[1], [0], [0], [1], [0, 0, 1, 1], [], []>} : vector<16x32xf32>, vector<32x64xf32>, vector<16x64xf32> -> vector<16x64xf32>
    %c0_69 = arith.constant 0 : index
    %c0_70 = arith.constant 0 : index
    %c0_71 = arith.constant 0 : index
    %152 = vector.load %arg11[%c0_69, %c0_70, %c0_71] : memref<2x1x64xf32, #tpu.memory_space<vmem>>, vector<1x1x64xf32>
    %153 = vector.shape_cast %152 : vector<1x1x64xf32> to vector<1x64xf32>
    %154 = vector.broadcast %153 : vector<1x64xf32> to vector<16x64xf32>
    %155 = arith.addf %151, %154 : vector<16x64xf32>
    %156 = arith.mulf %155, %155 : vector<16x64xf32>
    %157 = arith.mulf %155, %156 : vector<16x64xf32>
    %cst_72 = arith.constant 4.471500e-02 : f32
    %158 = vector.broadcast %cst_72 : f32 to vector<16x64xf32>
    %159 = arith.mulf %158, %157 : vector<16x64xf32>
    %160 = arith.addf %155, %159 : vector<16x64xf32>
    %cst_73 = arith.constant 0.797884583 : f32
    %161 = vector.broadcast %cst_73 : f32 to vector<16x64xf32>
    %162 = arith.mulf %161, %160 : vector<16x64xf32>
    %163 = math.tanh %162 : vector<16x64xf32>
    %cst_74 = arith.constant 1.000000e+00 : f32
    %164 = vector.broadcast %cst_74 : f32 to vector<16x64xf32>
    %165 = arith.addf %164, %163 : vector<16x64xf32>
    %cst_75 = arith.constant 5.000000e-01 : f32
    %166 = vector.broadcast %cst_75 : f32 to vector<16x64xf32>
    %167 = arith.mulf %166, %165 : vector<16x64xf32>
    %168 = arith.mulf %155, %167 : vector<16x64xf32>
    %c0_76 = arith.constant 0 : index
    %c0_77 = arith.constant 0 : index
    %c0_78 = arith.constant 0 : index
    %169 = vector.load %arg12[%c0_76, %c0_77, %c0_78] : memref<2x64x32xf32, #tpu.memory_space<vmem>>, vector<1x64x32xf32>
    %170 = vector.shape_cast %169 : vector<1x64x32xf32> to vector<64x32xf32>
    %cst_79 = arith.constant dense<0.000000e+00> : vector<16x32xf32>
    %171 = tpu.matmul %168, %170, %cst_79 {dimension_numbers = #tpu.dot_dimension_numbers<[1], [0], [0], [1], [0, 0, 1, 1], [], []>} : vector<16x64xf32>, vector<64x32xf32>, vector<16x32xf32> -> vector<16x32xf32>
    %c0_80 = arith.constant 0 : index
    %c0_81 = arith.constant 0 : index
    %c0_82 = arith.constant 0 : index
    %172 = vector.load %arg13[%c0_80, %c0_81, %c0_82] : memref<2x1x32xf32, #tpu.memory_space<vmem>>, vector<1x1x32xf32>
    %173 = vector.shape_cast %172 : vector<1x1x32xf32> to vector<1x32xf32>
    %174 = vector.broadcast %173 : vector<1x32xf32> to vector<16x32xf32>
    %175 = arith.addf %171, %174 : vector<16x32xf32>
    %176 = arith.addf %175, %148 : vector<16x32xf32>
    %c0_83 = arith.constant 0 : index
    %c0_84 = arith.constant 0 : index
    %c0_85 = arith.constant 0 : index
    %177 = vector.load %arg14[%c0_83, %c0_84, %c0_85] : memref<2x1x32xf32, #tpu.memory_space<vmem>>, vector<1x1x32xf32>
    %178 = vector.shape_cast %177 : vector<1x1x32xf32> to vector<1x32xf32>
    %c0_86 = arith.constant 0 : index
    %c0_87 = arith.constant 0 : index
    %c0_88 = arith.constant 0 : index
    %179 = vector.load %arg15[%c0_86, %c0_87, %c0_88] : memref<2x1x32xf32, #tpu.memory_space<vmem>>, vector<1x1x32xf32>
    %180 = vector.shape_cast %179 : vector<1x1x32xf32> to vector<1x32xf32>
    %cst_89 = arith.constant dense<0.000000e+00> : vector<16xf32>
    %181 = vector.multi_reduction <add>, %176, %cst_89 [1] : vector<16x32xf32> to vector<16xf32>
    %182 = vector.shape_cast %181 : vector<16xf32> to vector<16x1xf32>
    %cst_90 = arith.constant 3.200000e+01 : f32
    %183 = vector.broadcast %cst_90 : f32 to vector<16x1xf32>
    %184 = arith.divf %182, %183 : vector<16x1xf32>
    %185 = vector.broadcast %184 : vector<16x1xf32> to vector<16x32xf32>
    %186 = arith.subf %176, %185 : vector<16x32xf32>
    %187 = arith.mulf %186, %186 : vector<16x32xf32>
    %cst_91 = arith.constant dense<0.000000e+00> : vector<16xf32>
    %188 = vector.multi_reduction <add>, %187, %cst_91 [1] : vector<16x32xf32> to vector<16xf32>
    %189 = vector.shape_cast %188 : vector<16xf32> to vector<16x1xf32>
    %cst_92 = arith.constant 3.200000e+01 : f32
    %190 = vector.broadcast %cst_92 : f32 to vector<16x1xf32>
    %191 = arith.divf %189, %190 : vector<16x1xf32>
    %192 = vector.broadcast %184 : vector<16x1xf32> to vector<16x32xf32>
    %193 = arith.subf %176, %192 : vector<16x32xf32>
    %cst_93 = arith.constant 9.99999996E-13 : f32
    %194 = vector.broadcast %cst_93 : f32 to vector<16x1xf32>
    %195 = arith.addf %191, %194 : vector<16x1xf32>
    %196 = math.rsqrt %195 : vector<16x1xf32>
    %197 = vector.broadcast %196 : vector<16x1xf32> to vector<16x32xf32>
    %198 = arith.mulf %193, %197 : vector<16x32xf32>
    %199 = vector.broadcast %178 : vector<1x32xf32> to vector<16x32xf32>
    %200 = arith.mulf %198, %199 : vector<16x32xf32>
    %201 = vector.broadcast %180 : vector<1x32xf32> to vector<16x32xf32>
    %202 = arith.addf %200, %201 : vector<16x32xf32>
    %c1_94 = arith.constant 1 : index
    %c0_95 = arith.constant 0 : index
    %c0_96 = arith.constant 0 : index
    %203 = vector.load %arg4[%c1_94, %c0_95, %c0_96] : memref<2x32x96xf32, #tpu.memory_space<vmem>>, vector<1x32x96xf32>
    %204 = vector.shape_cast %203 : vector<1x32x96xf32> to vector<32x96xf32>
    %cst_97 = arith.constant dense<0.000000e+00> : vector<16x96xf32>
    %205 = tpu.matmul %202, %204, %cst_97 {dimension_numbers = #tpu.dot_dimension_numbers<[1], [0], [0], [1], [0, 0, 1, 1], [], []>} : vector<16x32xf32>, vector<32x96xf32>, vector<16x96xf32> -> vector<16x96xf32>
    %c1_98 = arith.constant 1 : index
    %c0_99 = arith.constant 0 : index
    %c0_100 = arith.constant 0 : index
    %206 = vector.load %arg5[%c1_98, %c0_99, %c0_100] : memref<2x1x96xf32, #tpu.memory_space<vmem>>, vector<1x1x96xf32>
    %207 = vector.shape_cast %206 : vector<1x1x96xf32> to vector<1x96xf32>
    %208 = vector.broadcast %207 : vector<1x96xf32> to vector<16x96xf32>
    %209 = arith.addf %205, %208 : vector<16x96xf32>
    %c0_101 = arith.constant 0 : index
    %c0_102 = arith.constant 0 : index
    %210 = vector.load %arg1[%c0_101, %c0_102] : memref<2x8xf32, #tpu.memory_space<vmem>>, vector<1x8xf32>
    %211 = vector.extract_strided_slice %209 {offsets = [0, 0], sizes = [8, 16], strides = [1, 1]} : vector<16x96xf32> to vector<8x16xf32>
    %212 = vector.extract_strided_slice %209 {offsets = [0, 32], sizes = [8, 16], strides = [1, 1]} : vector<16x96xf32> to vector<8x16xf32>
    %213 = vector.extract_strided_slice %209 {offsets = [0, 64], sizes = [8, 16], strides = [1, 1]} : vector<16x96xf32> to vector<8x16xf32>
    "tpu.trace_start"() <{level = 10 : i32, message = "qd,kd->qk"}> : () -> ()
    %cst_103 = arith.constant dense<0.000000e+00> : vector<8x8xf32>
    %214 = tpu.matmul %211, %212, %cst_103 {dimension_numbers = #tpu.dot_dimension_numbers<[1], [1], [0], [0], [0, 0, 1, 0], [], []>} : vector<8x16xf32>, vector<8x16xf32>, vector<8x8xf32> -> vector<8x8xf32>
    "tpu.trace_stop"() : () -> ()
    %cst_104 = arith.constant 2.500000e-01 : f32
    %215 = vector.broadcast %cst_104 : f32 to vector<8x8xf32>
    %216 = arith.mulf %214, %215 : vector<8x8xf32>
    %217 = vector.broadcast %210 : vector<1x8xf32> to vector<8x8xf32>
    %218 = arith.addf %216, %217 : vector<8x8xf32>
    %cst_105 = arith.constant dense<0xFF800000> : vector<8xf32>
    %219 = vector.multi_reduction <maximumf>, %218, %cst_105 [1] : vector<8x8xf32> to vector<8xf32>
    %220 = vector.shape_cast %219 : vector<8xf32> to vector<8x1xf32>
    %221 = vector.broadcast %220 : vector<8x1xf32> to vector<8x8xf32>
    %222 = arith.subf %218, %221 : vector<8x8xf32>
    %223 = math.exp %222 : vector<8x8xf32>
    %cst_106 = arith.constant dense<0.000000e+00> : vector<8xf32>
    %224 = vector.multi_reduction <add>, %223, %cst_106 [1] : vector<8x8xf32> to vector<8xf32>
    %225 = vector.shape_cast %224 : vector<8xf32> to vector<8x1xf32>
    %226 = tpu.reciprocal %225 {approx = true} : vector<8x1xf32> -> vector<8x1xf32>
    %227 = vector.broadcast %226 : vector<8x1xf32> to vector<8x8xf32>
    %228 = arith.mulf %223, %227 : vector<8x8xf32>
    %cst_107 = arith.constant dense<0.000000e+00> : vector<8x16xf32>
    %229 = tpu.matmul %228, %213, %cst_107 {dimension_numbers = #tpu.dot_dimension_numbers<[1], [0], [0], [1], [0, 0, 1, 1], [], []>} : vector<8x8xf32>, vector<8x16xf32>, vector<8x16xf32> -> vector<8x16xf32>
    %c0_108 = arith.constant 0 : index
    %c0_109 = arith.constant 0 : index
    %230 = vector.load %arg21[%c0_108, %c0_109] : memref<16x32xf32, #tpu.memory_space<vmem>>, vector<8x16xf32>
    tpu.vector_store %arg21[%c0_108, %c0_109], %229 {strides = array<i32>} : memref<16x32xf32, #tpu.memory_space<vmem>>, vector<8x16xf32>,
    %231 = vector.extract_strided_slice %209 {offsets = [0, 16], sizes = [8, 16], strides = [1, 1]} : vector<16x96xf32> to vector<8x16xf32>
    %232 = vector.extract_strided_slice %209 {offsets = [0, 48], sizes = [8, 16], strides = [1, 1]} : vector<16x96xf32> to vector<8x16xf32>
    %233 = vector.extract_strided_slice %209 {offsets = [0, 80], sizes = [8, 16], strides = [1, 1]} : vector<16x96xf32> to vector<8x16xf32>
    "tpu.trace_start"() <{level = 10 : i32, message = "qd,kd->qk"}> : () -> ()
    %cst_110 = arith.constant dense<0.000000e+00> : vector<8x8xf32>
    %234 = tpu.matmul %231, %232, %cst_110 {dimension_numbers = #tpu.dot_dimension_numbers<[1], [1], [0], [0], [0, 0, 1, 0], [], []>} : vector<8x16xf32>, vector<8x16xf32>, vector<8x8xf32> -> vector<8x8xf32>
    "tpu.trace_stop"() : () -> ()
    %cst_111 = arith.constant 2.500000e-01 : f32
    %235 = vector.broadcast %cst_111 : f32 to vector<8x8xf32>
    %236 = arith.mulf %234, %235 : vector<8x8xf32>
    %237 = vector.broadcast %210 : vector<1x8xf32> to vector<8x8xf32>
    %238 = arith.addf %236, %237 : vector<8x8xf32>
    %cst_112 = arith.constant dense<0xFF800000> : vector<8xf32>
    %239 = vector.multi_reduction <maximumf>, %238, %cst_112 [1] : vector<8x8xf32> to vector<8xf32>
    %240 = vector.shape_cast %239 : vector<8xf32> to vector<8x1xf32>
    %241 = vector.broadcast %240 : vector<8x1xf32> to vector<8x8xf32>
    %242 = arith.subf %238, %241 : vector<8x8xf32>
    %243 = math.exp %242 : vector<8x8xf32>
    %cst_113 = arith.constant dense<0.000000e+00> : vector<8xf32>
    %244 = vector.multi_reduction <add>, %243, %cst_113 [1] : vector<8x8xf32> to vector<8xf32>
    %245 = vector.shape_cast %244 : vector<8xf32> to vector<8x1xf32>
    %246 = tpu.reciprocal %245 {approx = true} : vector<8x1xf32> -> vector<8x1xf32>
    %247 = vector.broadcast %246 : vector<8x1xf32> to vector<8x8xf32>
    %248 = arith.mulf %243, %247 : vector<8x8xf32>
    %cst_114 = arith.constant dense<0.000000e+00> : vector<8x16xf32>
    %249 = tpu.matmul %248, %233, %cst_114 {dimension_numbers = #tpu.dot_dimension_numbers<[1], [0], [0], [1], [0, 0, 1, 1], [], []>} : vector<8x8xf32>, vector<8x16xf32>, vector<8x16xf32> -> vector<8x16xf32>
    %c0_115 = arith.constant 0 : index
    %c16_116 = arith.constant 16 : index
    %250 = vector.load %arg21[%c0_115, %c16_116] : memref<16x32xf32, #tpu.memory_space<vmem>>, vector<8x16xf32>
    tpu.vector_store %arg21[%c0_115, %c16_116], %249 {strides = array<i32>} : memref<16x32xf32, #tpu.memory_space<vmem>>, vector<8x16xf32>,
    %c1_117 = arith.constant 1 : index
    %c0_118 = arith.constant 0 : index
    %251 = vector.load %arg1[%c1_117, %c0_118] : memref<2x8xf32, #tpu.memory_space<vmem>>, vector<1x8xf32>
    %252 = vector.extract_strided_slice %209 {offsets = [8, 0], sizes = [8, 16], strides = [1, 1]} : vector<16x96xf32> to vector<8x16xf32>
    %253 = vector.extract_strided_slice %209 {offsets = [8, 32], sizes = [8, 16], strides = [1, 1]} : vector<16x96xf32> to vector<8x16xf32>
    %254 = vector.extract_strided_slice %209 {offsets = [8, 64], sizes = [8, 16], strides = [1, 1]} : vector<16x96xf32> to vector<8x16xf32>
    "tpu.trace_start"() <{level = 10 : i32, message = "qd,kd->qk"}> : () -> ()
    %cst_119 = arith.constant dense<0.000000e+00> : vector<8x8xf32>
    %255 = tpu.matmul %252, %253, %cst_119 {dimension_numbers = #tpu.dot_dimension_numbers<[1], [1], [0], [0], [0, 0, 1, 0], [], []>} : vector<8x16xf32>, vector<8x16xf32>, vector<8x8xf32> -> vector<8x8xf32>
    "tpu.trace_stop"() : () -> ()
    %cst_120 = arith.constant 2.500000e-01 : f32
    %256 = vector.broadcast %cst_120 : f32 to vector<8x8xf32>
    %257 = arith.mulf %255, %256 : vector<8x8xf32>
    %258 = vector.broadcast %251 : vector<1x8xf32> to vector<8x8xf32>
    %259 = arith.addf %257, %258 : vector<8x8xf32>
    %cst_121 = arith.constant dense<0xFF800000> : vector<8xf32>
    %260 = vector.multi_reduction <maximumf>, %259, %cst_121 [1] : vector<8x8xf32> to vector<8xf32>
    %261 = vector.shape_cast %260 : vector<8xf32> to vector<8x1xf32>
    %262 = vector.broadcast %261 : vector<8x1xf32> to vector<8x8xf32>
    %263 = arith.subf %259, %262 : vector<8x8xf32>
    %264 = math.exp %263 : vector<8x8xf32>
    %cst_122 = arith.constant dense<0.000000e+00> : vector<8xf32>
    %265 = vector.multi_reduction <add>, %264, %cst_122 [1] : vector<8x8xf32> to vector<8xf32>
    %266 = vector.shape_cast %265 : vector<8xf32> to vector<8x1xf32>
    %267 = tpu.reciprocal %266 {approx = true} : vector<8x1xf32> -> vector<8x1xf32>
    %268 = vector.broadcast %267 : vector<8x1xf32> to vector<8x8xf32>
    %269 = arith.mulf %264, %268 : vector<8x8xf32>
    %cst_123 = arith.constant dense<0.000000e+00> : vector<8x16xf32>
    %270 = tpu.matmul %269, %254, %cst_123 {dimension_numbers = #tpu.dot_dimension_numbers<[1], [0], [0], [1], [0, 0, 1, 1], [], []>} : vector<8x8xf32>, vector<8x16xf32>, vector<8x16xf32> -> vector<8x16xf32>
    %c8_124 = arith.constant 8 : index
    %c0_125 = arith.constant 0 : index
    %271 = vector.load %arg21[%c8_124, %c0_125] : memref<16x32xf32, #tpu.memory_space<vmem>>, vector<8x16xf32>
    tpu.vector_store %arg21[%c8_124, %c0_125], %270 {strides = array<i32>} : memref<16x32xf32, #tpu.memory_space<vmem>>, vector<8x16xf32>,
    %272 = vector.extract_strided_slice %209 {offsets = [8, 16], sizes = [8, 16], strides = [1, 1]} : vector<16x96xf32> to vector<8x16xf32>
    %273 = vector.extract_strided_slice %209 {offsets = [8, 48], sizes = [8, 16], strides = [1, 1]} : vector<16x96xf32> to vector<8x16xf32>
    %274 = vector.extract_strided_slice %209 {offsets = [8, 80], sizes = [8, 16], strides = [1, 1]} : vector<16x96xf32> to vector<8x16xf32>
    "tpu.trace_start"() <{level = 10 : i32, message = "qd,kd->qk"}> : () -> ()
    %cst_126 = arith.constant dense<0.000000e+00> : vector<8x8xf32>
    %275 = tpu.matmul %272, %273, %cst_126 {dimension_numbers = #tpu.dot_dimension_numbers<[1], [1], [0], [0], [0, 0, 1, 0], [], []>} : vector<8x16xf32>, vector<8x16xf32>, vector<8x8xf32> -> vector<8x8xf32>
    "tpu.trace_stop"() : () -> ()
    %cst_127 = arith.constant 2.500000e-01 : f32
    %276 = vector.broadcast %cst_127 : f32 to vector<8x8xf32>
    %277 = arith.mulf %275, %276 : vector<8x8xf32>
    %278 = vector.broadcast %251 : vector<1x8xf32> to vector<8x8xf32>
    %279 = arith.addf %277, %278 : vector<8x8xf32>
    %cst_128 = arith.constant dense<0xFF800000> : vector<8xf32>
    %280 = vector.multi_reduction <maximumf>, %279, %cst_128 [1] : vector<8x8xf32> to vector<8xf32>
    %281 = vector.shape_cast %280 : vector<8xf32> to vector<8x1xf32>
    %282 = vector.broadcast %281 : vector<8x1xf32> to vector<8x8xf32>
    %283 = arith.subf %279, %282 : vector<8x8xf32>
    %284 = math.exp %283 : vector<8x8xf32>
    %cst_129 = arith.constant dense<0.000000e+00> : vector<8xf32>
    %285 = vector.multi_reduction <add>, %284, %cst_129 [1] : vector<8x8xf32> to vector<8xf32>
    %286 = vector.shape_cast %285 : vector<8xf32> to vector<8x1xf32>
    %287 = tpu.reciprocal %286 {approx = true} : vector<8x1xf32> -> vector<8x1xf32>
    %288 = vector.broadcast %287 : vector<8x1xf32> to vector<8x8xf32>
    %289 = arith.mulf %284, %288 : vector<8x8xf32>
    %cst_130 = arith.constant dense<0.000000e+00> : vector<8x16xf32>
    %290 = tpu.matmul %289, %274, %cst_130 {dimension_numbers = #tpu.dot_dimension_numbers<[1], [0], [0], [1], [0, 0, 1, 1], [], []>} : vector<8x8xf32>, vector<8x16xf32>, vector<8x16xf32> -> vector<8x16xf32>
    %c8_131 = arith.constant 8 : index
    %c16_132 = arith.constant 16 : index
    %291 = vector.load %arg21[%c8_131, %c16_132] : memref<16x32xf32, #tpu.memory_space<vmem>>, vector<8x16xf32>
    tpu.vector_store %arg21[%c8_131, %c16_132], %290 {strides = array<i32>} : memref<16x32xf32, #tpu.memory_space<vmem>>, vector<8x16xf32>,
    %c0_133 = arith.constant 0 : index
    %c0_134 = arith.constant 0 : index
    %292 = vector.load %arg21[%c0_133, %c0_134] : memref<16x32xf32, #tpu.memory_space<vmem>>, vector<16x32xf32>
    %c1_135 = arith.constant 1 : index
    %c0_136 = arith.constant 0 : index
    %c0_137 = arith.constant 0 : index
    %293 = vector.load %arg6[%c1_135, %c0_136, %c0_137] : memref<2x32x32xf32, #tpu.memory_space<vmem>>, vector<1x32x32xf32>
    %294 = vector.shape_cast %293 : vector<1x32x32xf32> to vector<32x32xf32>
    %cst_138 = arith.constant dense<0.000000e+00> : vector<16x32xf32>
    %295 = tpu.matmul %292, %294, %cst_138 {dimension_numbers = #tpu.dot_dimension_numbers<[1], [0], [0], [1], [0, 0, 1, 1], [], []>} : vector<16x32xf32>, vector<32x32xf32>, vector<16x32xf32> -> vector<16x32xf32>
    %c1_139 = arith.constant 1 : index
    %c0_140 = arith.constant 0 : index
    %c0_141 = arith.constant 0 : index
    %296 = vector.load %arg7[%c1_139, %c0_140, %c0_141] : memref<2x1x32xf32, #tpu.memory_space<vmem>>, vector<1x1x32xf32>
    %297 = vector.shape_cast %296 : vector<1x1x32xf32> to vector<1x32xf32>
    %298 = vector.broadcast %297 : vector<1x32xf32> to vector<16x32xf32>
    %299 = arith.addf %295, %298 : vector<16x32xf32>
    %300 = arith.addf %299, %202 : vector<16x32xf32>
    %c1_142 = arith.constant 1 : index
    %c0_143 = arith.constant 0 : index
    %c0_144 = arith.constant 0 : index
    %301 = vector.load %arg8[%c1_142, %c0_143, %c0_144] : memref<2x1x32xf32, #tpu.memory_space<vmem>>, vector<1x1x32xf32>
    %302 = vector.shape_cast %301 : vector<1x1x32xf32> to vector<1x32xf32>
    %c1_145 = arith.constant 1 : index
    %c0_146 = arith.constant 0 : index
    %c0_147 = arith.constant 0 : index
    %303 = vector.load %arg9[%c1_145, %c0_146, %c0_147] : memref<2x1x32xf32, #tpu.memory_space<vmem>>, vector<1x1x32xf32>
    %304 = vector.shape_cast %303 : vector<1x1x32xf32> to vector<1x32xf32>
    %cst_148 = arith.constant dense<0.000000e+00> : vector<16xf32>
    %305 = vector.multi_reduction <add>, %300, %cst_148 [1] : vector<16x32xf32> to vector<16xf32>
    %306 = vector.shape_cast %305 : vector<16xf32> to vector<16x1xf32>
    %cst_149 = arith.constant 3.200000e+01 : f32
    %307 = vector.broadcast %cst_149 : f32 to vector<16x1xf32>
    %308 = arith.divf %306, %307 : vector<16x1xf32>
    %309 = vector.broadcast %308 : vector<16x1xf32> to vector<16x32xf32>
    %310 = arith.subf %300, %309 : vector<16x32xf32>
    %311 = arith.mulf %310, %310 : vector<16x32xf32>
    %cst_150 = arith.constant dense<0.000000e+00> : vector<16xf32>
    %312 = vector.multi_reduction <add>, %311, %cst_150 [1] : vector<16x32xf32> to vector<16xf32>
    %313 = vector.shape_cast %312 : vector<16xf32> to vector<16x1xf32>
    %cst_151 = arith.constant 3.200000e+01 : f32
    %314 = vector.broadcast %cst_151 : f32 to vector<16x1xf32>
    %315 = arith.divf %313, %314 : vector<16x1xf32>
    %316 = vector.broadcast %308 : vector<16x1xf32> to vector<16x32xf32>
    %317 = arith.subf %300, %316 : vector<16x32xf32>
    %cst_152 = arith.constant 9.99999996E-13 : f32
    %318 = vector.broadcast %cst_152 : f32 to vector<16x1xf32>
    %319 = arith.addf %315, %318 : vector<16x1xf32>
    %320 = math.rsqrt %319 : vector<16x1xf32>
    %321 = vector.broadcast %320 : vector<16x1xf32> to vector<16x32xf32>
    %322 = arith.mulf %317, %321 : vector<16x32xf32>
    %323 = vector.broadcast %302 : vector<1x32xf32> to vector<16x32xf32>
    %324 = arith.mulf %322, %323 : vector<16x32xf32>
    %325 = vector.broadcast %304 : vector<1x32xf32> to vector<16x32xf32>
    %326 = arith.addf %324, %325 : vector<16x32xf32>
    %c1_153 = arith.constant 1 : index
    %c0_154 = arith.constant 0 : index
    %c0_155 = arith.constant 0 : index
    %327 = vector.load %arg10[%c1_153, %c0_154, %c0_155] : memref<2x32x64xf32, #tpu.memory_space<vmem>>, vector<1x32x64xf32>
    %328 = vector.shape_cast %327 : vector<1x32x64xf32> to vector<32x64xf32>
    %cst_156 = arith.constant dense<0.000000e+00> : vector<16x64xf32>
    %329 = tpu.matmul %326, %328, %cst_156 {dimension_numbers = #tpu.dot_dimension_numbers<[1], [0], [0], [1], [0, 0, 1, 1], [], []>} : vector<16x32xf32>, vector<32x64xf32>, vector<16x64xf32> -> vector<16x64xf32>
    %c1_157 = arith.constant 1 : index
    %c0_158 = arith.constant 0 : index
    %c0_159 = arith.constant 0 : index
    %330 = vector.load %arg11[%c1_157, %c0_158, %c0_159] : memref<2x1x64xf32, #tpu.memory_space<vmem>>, vector<1x1x64xf32>
    %331 = vector.shape_cast %330 : vector<1x1x64xf32> to vector<1x64xf32>
    %332 = vector.broadcast %331 : vector<1x64xf32> to vector<16x64xf32>
    %333 = arith.addf %329, %332 : vector<16x64xf32>
    %334 = arith.mulf %333, %333 : vector<16x64xf32>
    %335 = arith.mulf %333, %334 : vector<16x64xf32>
    %cst_160 = arith.constant 4.471500e-02 : f32
    %336 = vector.broadcast %cst_160 : f32 to vector<16x64xf32>
    %337 = arith.mulf %336, %335 : vector<16x64xf32>
    %338 = arith.addf %333, %337 : vector<16x64xf32>
    %cst_161 = arith.constant 0.797884583 : f32
    %339 = vector.broadcast %cst_161 : f32 to vector<16x64xf32>
    %340 = arith.mulf %339, %338 : vector<16x64xf32>
    %341 = math.tanh %340 : vector<16x64xf32>
    %cst_162 = arith.constant 1.000000e+00 : f32
    %342 = vector.broadcast %cst_162 : f32 to vector<16x64xf32>
    %343 = arith.addf %342, %341 : vector<16x64xf32>
    %cst_163 = arith.constant 5.000000e-01 : f32
    %344 = vector.broadcast %cst_163 : f32 to vector<16x64xf32>
    %345 = arith.mulf %344, %343 : vector<16x64xf32>
    %346 = arith.mulf %333, %345 : vector<16x64xf32>
    %c1_164 = arith.constant 1 : index
    %c0_165 = arith.constant 0 : index
    %c0_166 = arith.constant 0 : index
    %347 = vector.load %arg12[%c1_164, %c0_165, %c0_166] : memref<2x64x32xf32, #tpu.memory_space<vmem>>, vector<1x64x32xf32>
    %348 = vector.shape_cast %347 : vector<1x64x32xf32> to vector<64x32xf32>
    %cst_167 = arith.constant dense<0.000000e+00> : vector<16x32xf32>
    %349 = tpu.matmul %346, %348, %cst_167 {dimension_numbers = #tpu.dot_dimension_numbers<[1], [0], [0], [1], [0, 0, 1, 1], [], []>} : vector<16x64xf32>, vector<64x32xf32>, vector<16x32xf32> -> vector<16x32xf32>
    %c1_168 = arith.constant 1 : index
    %c0_169 = arith.constant 0 : index
    %c0_170 = arith.constant 0 : index
    %350 = vector.load %arg13[%c1_168, %c0_169, %c0_170] : memref<2x1x32xf32, #tpu.memory_space<vmem>>, vector<1x1x32xf32>
    %351 = vector.shape_cast %350 : vector<1x1x32xf32> to vector<1x32xf32>
    %352 = vector.broadcast %351 : vector<1x32xf32> to vector<16x32xf32>
    %353 = arith.addf %349, %352 : vector<16x32xf32>
    %354 = arith.addf %353, %326 : vector<16x32xf32>
    %c1_171 = arith.constant 1 : index
    %c0_172 = arith.constant 0 : index
    %c0_173 = arith.constant 0 : index
    %355 = vector.load %arg14[%c1_171, %c0_172, %c0_173] : memref<2x1x32xf32, #tpu.memory_space<vmem>>, vector<1x1x32xf32>
    %356 = vector.shape_cast %355 : vector<1x1x32xf32> to vector<1x32xf32>
    %c1_174 = arith.constant 1 : index
    %c0_175 = arith.constant 0 : index
    %c0_176 = arith.constant 0 : index
    %357 = vector.load %arg15[%c1_174, %c0_175, %c0_176] : memref<2x1x32xf32, #tpu.memory_space<vmem>>, vector<1x1x32xf32>
    %358 = vector.shape_cast %357 : vector<1x1x32xf32> to vector<1x32xf32>
    %cst_177 = arith.constant dense<0.000000e+00> : vector<16xf32>
    %359 = vector.multi_reduction <add>, %354, %cst_177 [1] : vector<16x32xf32> to vector<16xf32>
    %360 = vector.shape_cast %359 : vector<16xf32> to vector<16x1xf32>
    %cst_178 = arith.constant 3.200000e+01 : f32
    %361 = vector.broadcast %cst_178 : f32 to vector<16x1xf32>
    %362 = arith.divf %360, %361 : vector<16x1xf32>
    %363 = vector.broadcast %362 : vector<16x1xf32> to vector<16x32xf32>
    %364 = arith.subf %354, %363 : vector<16x32xf32>
    %365 = arith.mulf %364, %364 : vector<16x32xf32>
    %cst_179 = arith.constant dense<0.000000e+00> : vector<16xf32>
    %366 = vector.multi_reduction <add>, %365, %cst_179 [1] : vector<16x32xf32> to vector<16xf32>
    %367 = vector.shape_cast %366 : vector<16xf32> to vector<16x1xf32>
    %cst_180 = arith.constant 3.200000e+01 : f32
    %368 = vector.broadcast %cst_180 : f32 to vector<16x1xf32>
    %369 = arith.divf %367, %368 : vector<16x1xf32>
    %370 = vector.broadcast %362 : vector<16x1xf32> to vector<16x32xf32>
    %371 = arith.subf %354, %370 : vector<16x32xf32>
    %cst_181 = arith.constant 9.99999996E-13 : f32
    %372 = vector.broadcast %cst_181 : f32 to vector<16x1xf32>
    %373 = arith.addf %369, %372 : vector<16x1xf32>
    %374 = math.rsqrt %373 : vector<16x1xf32>
    %375 = vector.broadcast %374 : vector<16x1xf32> to vector<16x32xf32>
    %376 = arith.mulf %371, %375 : vector<16x32xf32>
    %377 = vector.broadcast %356 : vector<1x32xf32> to vector<16x32xf32>
    %378 = arith.mulf %376, %377 : vector<16x32xf32>
    %379 = vector.broadcast %358 : vector<1x32xf32> to vector<16x32xf32>
    %380 = arith.addf %378, %379 : vector<16x32xf32>
    %c0_182 = arith.constant 0 : index
    %c0_183 = arith.constant 0 : index
    %381 = vector.load %arg16[%c0_182, %c0_183] : memref<32x32xf32, #tpu.memory_space<vmem>>, vector<32x32xf32>
    %cst_184 = arith.constant dense<0.000000e+00> : vector<16x32xf32>
    %382 = tpu.matmul %380, %381, %cst_184 {dimension_numbers = #tpu.dot_dimension_numbers<[1], [0], [0], [1], [0, 0, 1, 1], [], []>} : vector<16x32xf32>, vector<32x32xf32>, vector<16x32xf32> -> vector<16x32xf32>
    %c0_185 = arith.constant 0 : index
    %c0_186 = arith.constant 0 : index
    %383 = vector.load %arg17[%c0_185, %c0_186] : memref<1x32xf32, #tpu.memory_space<vmem>>, vector<1x32xf32>
    %384 = vector.broadcast %383 : vector<1x32xf32> to vector<16x32xf32>
    %385 = arith.addf %382, %384 : vector<16x32xf32>
    %386 = math.tanh %385 : vector<16x32xf32>
    %c0_187 = arith.constant 0 : index
    %c0_188 = arith.constant 0 : index
    %387 = vector.load %arg18[%c0_187, %c0_188] : memref<32x2xf32, #tpu.memory_space<vmem>>, vector<32x2xf32>
    %cst_189 = arith.constant dense<0.000000e+00> : vector<16x2xf32>
    %388 = tpu.matmul %386, %387, %cst_189 {dimension_numbers = #tpu.dot_dimension_numbers<[1], [0], [0], [1], [0, 0, 1, 1], [], []>} : vector<16x32xf32>, vector<32x2xf32>, vector<16x2xf32> -> vector<16x2xf32>
    %c0_190 = arith.constant 0 : index
    %c0_191 = arith.constant 0 : index
    %389 = vector.load %arg19[%c0_190, %c0_191] : memref<1x2xf32, #tpu.memory_space<vmem>>, vector<1x2xf32>
    %390 = vector.broadcast %389 : vector<1x2xf32> to vector<16x2xf32>
    %391 = arith.addf %388, %390 : vector<16x2xf32>
    %392 = vector.extract_strided_slice %391 {offsets = [0, 0], sizes = [1, 2], strides = [1, 1]} : vector<16x2xf32> to vector<1x2xf32>
    %c0_192 = arith.constant 0 : index
    %c0_193 = arith.constant 0 : index
    %393 = vector.load %arg20[%c0_192, %c0_193] : memref<2x2xf32, #tpu.memory_space<vmem>>, vector<1x2xf32>
    tpu.vector_store %arg20[%c0_192, %c0_193], %392 {strides = array<i32>} : memref<2x2xf32, #tpu.memory_space<vmem>>, vector<1x2xf32>,
    %394 = vector.extract_strided_slice %391 {offsets = [8, 0], sizes = [1, 2], strides = [1, 1]} : vector<16x2xf32> to vector<1x2xf32>
    %c1_194 = arith.constant 1 : index
    %c0_195 = arith.constant 0 : index
    %395 = vector.load %arg20[%c1_194, %c0_195] : memref<2x2xf32, #tpu.memory_space<vmem>>, vector<1x2xf32>
    tpu.vector_store %arg20[%c1_194, %c0_195], %394 {strides = array<i32>} : memref<2x2xf32, #tpu.memory_space<vmem>>, vector<1x2xf32>,
    return
  }
}

</mosaic_0001>

<llo_original>
// kernel: forward.1
$region0: #{forward.1}
  #allocation0 [shape = 'u32[]', space=smem, size = 0x4, offset = 0x4, fixed_abs, tag = 'smem constant byte address 0x4 - core index']
  #allocation1 [shape = 'u32[72,128]{1,0:T(1,128)}', space=vmem, size = 0x9000, scoped, tag = 'internal scratch']
  #allocation2 [shape = 'f32[16,32]{1,0:T(8,128)}', space=vmem, size = 0x2000, scoped, tag = 'scratch operand']
  %s0 = inlined_call_operand.vmem [shape: f32[16,32], index: 0, kind: input, shape index: {}]
  %s1 = inlined_call_operand.vmem [shape: f32[2,8], index: 1, kind: input, shape index: {}]
  %s2 = inlined_call_operand.vmem [shape: f32[1,32], index: 2, kind: input, shape index: {}]
  %s3 = inlined_call_operand.vmem [shape: f32[1,32], index: 3, kind: input, shape index: {}]
  %s4 = inlined_call_operand.vmem [shape: f32[2,32,96], index: 4, kind: input, shape index: {}]
  %s5 = inlined_call_operand.vmem [shape: f32[2,1,96], index: 5, kind: input, shape index: {}]
  %s6 = inlined_call_operand.vmem [shape: f32[2,32,32], index: 6, kind: input, shape index: {}]
  %s7 = inlined_call_operand.vmem [shape: f32[2,1,32], index: 7, kind: input, shape index: {}]
  %s8 = inlined_call_operand.vmem [shape: f32[2,1,32], index: 8, kind: input, shape index: {}]
  %s9 = inlined_call_operand.vmem [shape: f32[2,1,32], index: 9, kind: input, shape index: {}]
  %s10 = inlined_call_operand.vmem [shape: f32[2,32,64], index: 10, kind: input, shape index: {}]
  %s11 = inlined_call_operand.vmem [shape: f32[2,1,64], index: 11, kind: input, shape index: {}]
  %s12 = inlined_call_operand.vmem [shape: f32[2,64,32], index: 12, kind: input, shape index: {}]
  %s13 = inlined_call_operand.vmem [shape: f32[2,1,32], index: 13, kind: input, shape index: {}]
  %s14 = inlined_call_operand.vmem [shape: f32[2,1,32], index: 14, kind: input, shape index: {}]
  %s15 = inlined_call_operand.vmem [shape: f32[2,1,32], index: 15, kind: input, shape index: {}]
  %s16 = inlined_call_operand.vmem [shape: f32[32,32], index: 16, kind: input, shape index: {}]
  %s17 = inlined_call_operand.vmem [shape: f32[1,32], index: 17, kind: input, shape index: {}]
  %s18 = inlined_call_operand.vmem [shape: f32[32,2], index: 18, kind: input, shape index: {}]
  %s19 = inlined_call_operand.vmem [shape: f32[1,2], index: 19, kind: input, shape index: {}]
  %s20 = inlined_call_operand.hbm [shape: f32[2,2], index: 20, kind: output, shape index: {}]
  %s21 = sld [smem:[#allocation0]]
  $region90: #{forward.1} parent=0
    _
  %s23 = ssub.s32 1, %s21
  %s24 = scalar_select 0, %s23, %s21
  $region1: #{forward.1} parent=0
    #allocation3 [shape = 'u8[1024]{0}', space=vmem, size = 0x400, scoped, tag = 'output window, operand 0, single buffered']
    #allocation4 [shape = 's32[1]{0}', space=sflag, size = 0x4, scoped, tag = 'scoped memory for forward.1']
    %25 = vsyncpa [#allocation4], 0
    // Predicated region
    $region2: #{forward.1} parent=1 // pred_check
      _
    $region3: #{forward.1} parent=1 // pred_check_branch
      %27 = sbr.rel (0) target = $region5
    $region4: #{forward.1} parent=1 // pred_region
      _
    $region5: #{forward.1} parent=1 // pred_fallthru
      _
    // Predicated region
    $region6: #{forward.1} parent=1 // pred_check
      _
    $region7: #{forward.1} parent=1 // pred_check_branch
      %29 = sbr.rel (0) target = $region9
    $region8: #{forward.1} parent=1 // pred_region
      _
    $region9: #{forward.1} parent=1 // pred_fallthru
      _
    // Predicated region
    $region10: #{forward.1} parent=1 // pred_check
      _
    $region11: #{forward.1} parent=1 // pred_check_branch
      %31 = sbr.rel (0) target = $region13
    $region12: #{forward.1} parent=1 // pred_region
      _
    $region13: #{forward.1} parent=1 // pred_fallthru
      _
    // Predicated region
    $region14: #{forward.1} parent=1 // pred_check
      _
    $region15: #{forward.1} parent=1 // pred_check_branch
      %33 = sbr.rel (0) target = $region17
    $region16: #{forward.1} parent=1 // pred_region
      _
    $region17: #{forward.1} parent=1 // pred_fallthru
      _
    // Predicated region
    $region18: #{forward.1} parent=1 // pred_check
      _
    $region19: #{forward.1} parent=1 // pred_check_branch
      %35 = sbr.rel (0) target = $region21
    $region20: #{forward.1} parent=1 // pred_region
      _
    $region21: #{forward.1} parent=1 // pred_fallthru
      _
    // Predicated region
    $region22: #{forward.1} parent=1 // pred_check
      _
    $region23: #{forward.1} parent=1 // pred_check_branch
      %37 = sbr.rel (0) target = $region25
    $region24: #{forward.1} parent=1 // pred_region
      _
    $region25: #{forward.1} parent=1 // pred_fallthru
      _
    // Predicated region
    $region26: #{forward.1} parent=1 // pred_check
      _
    $region27: #{forward.1} parent=1 // pred_check_branch
      %39 = sbr.rel (0) target = $region29
    $region28: #{forward.1} parent=1 // pred_region
      _
    $region29: #{forward.1} parent=1 // pred_fallthru
      _
    // Predicated region
    $region30: #{forward.1} parent=1 // pred_check
      _
    $region31: #{forward.1} parent=1 // pred_check_branch
      %41 = sbr.rel (0) target = $region33
    $region32: #{forward.1} parent=1 // pred_region
      _
    $region33: #{forward.1} parent=1 // pred_fallthru
      _
    // Predicated region
    $region34: #{forward.1} parent=1 // pred_check
      _
    $region35: #{forward.1} parent=1 // pred_check_branch
      %43 = sbr.rel (0) target = $region37
    $region36: #{forward.1} parent=1 // pred_region
      _
    $region37: #{forward.1} parent=1 // pred_fallthru
      _
    // Predicated region
    $region38: #{forward.1} parent=1 // pred_check
      _
    $region39: #{forward.1} parent=1 // pred_check_branch
      %45 = sbr.rel (0) target = $region41
    $region40: #{forward.1} parent=1 // pred_region
      _
    $region41: #{forward.1} parent=1 // pred_fallthru
      _
    // Predicated region
    $region42: #{forward.1} parent=1 // pred_check
      _
    $region43: #{forward.1} parent=1 // pred_check_branch
      %47 = sbr.rel (0) target = $region45
    $region44: #{forward.1} parent=1 // pred_region
      _
    $region45: #{forward.1} parent=1 // pred_fallthru
      _
    // Predicated region
    $region46: #{forward.1} parent=1 // pred_check
      _
    $region47: #{forward.1} parent=1 // pred_check_branch
      %49 = sbr.rel (0) target = $region49
    $region48: #{forward.1} parent=1 // pred_region
      _
    $region49: #{forward.1} parent=1 // pred_fallthru
      _
    // Predicated region
    $region50: #{forward.1} parent=1 // pred_check
      _
    $region51: #{forward.1} parent=1 // pred_check_branch
      %51 = sbr.rel (0) target = $region53
    $region52: #{forward.1} parent=1 // pred_region
      _
    $region53: #{forward.1} parent=1 // pred_fallthru
      _
    // Predicated region
    $region54: #{forward.1} parent=1 // pred_check
      _
    $region55: #{forward.1} parent=1 // pred_check_branch
      %53 = sbr.rel (0) target = $region57
    $region56: #{forward.1} parent=1 // pred_region
      _
    $region57: #{forward.1} parent=1 // pred_fallthru
      _
    // Predicated region
    $region58: #{forward.1} parent=1 // pred_check
      _
    $region59: #{forward.1} parent=1 // pred_check_branch
      %55 = sbr.rel (0) target = $region61
    $region60: #{forward.1} parent=1 // pred_region
      _
    $region61: #{forward.1} parent=1 // pred_fallthru
      _
    // Predicated region
    $region62: #{forward.1} parent=1 // pred_check
      _
    $region63: #{forward.1} parent=1 // pred_check_branch
      %57 = sbr.rel (0) target = $region65
    $region64: #{forward.1} parent=1 // pred_region
      _
    $region65: #{forward.1} parent=1 // pred_fallthru
      _
    // Predicated region
    $region66: #{forward.1} parent=1 // pred_check
      _
    $region67: #{forward.1} parent=1 // pred_check_branch
      %59 = sbr.rel (0) target = $region69
    $region68: #{forward.1} parent=1 // pred_region
      _
    $region69: #{forward.1} parent=1 // pred_fallthru
      _
    // Predicated region
    $region70: #{forward.1} parent=1 // pred_check
      _
    $region71: #{forward.1} parent=1 // pred_check_branch
      %61 = sbr.rel (0) target = $region73
    $region72: #{forward.1} parent=1 // pred_region
      _
    $region73: #{forward.1} parent=1 // pred_fallthru
      _
    // Predicated region
    $region74: #{forward.1} parent=1 // pred_check
      _
    $region75: #{forward.1} parent=1 // pred_check_branch
      %63 = sbr.rel (0) target = $region77
    $region76: #{forward.1} parent=1 // pred_region
      _
    $region77: #{forward.1} parent=1 // pred_fallthru
      _
    // Predicated region
    $region78: #{forward.1} parent=1 // pred_check
      _
    $region79: #{forward.1} parent=1 // pred_check_branch
      %65 = sbr.rel (0) target = $region81
    $region80: #{forward.1} parent=1 // pred_region
      _
    $region81: #{forward.1} parent=1 // pred_fallthru
      _
    %v66 = vld [vmem:[%s0] sm:$0xff]
    %v67 = vld [vmem:[%s0 + $0x8] sm:$0xff]
    %v68 = vld [vmem:[%s2] sm:$0x1]
    %v69 = vld [vmem:[%s3] sm:$0x1]
    %vm70 = vcmask 261120
    %v71 = vsel %vm70, %v66, 0.0
    %72 = vadd.xlane.f32.xlu0 %v71
    %v73 = vpop.xlane.xlu0 %72
    %v74 = vsel %vm70, %v67, 0.0
    %75 = vadd.xlane.f32.xlu0 %v74
    %v76 = vpop.xlane.xlu0 %75
    %v77 = vrcp.pop 32.0
    %v78 = vmul.f32 32.0, %v77
    %v79 = vsub.f32 1.0, %v78
    %v80 = vmul.f32 %v77, %v79
    %v81 = vadd.f32 %v77, %v80
    %vm82 = vweird.f32 %v77
    %v83 = vsel %vm82, %v77, %v81
    %v84 = vmul.f32 %v73, %v83
    %v85 = vmul.f32 %v76, %v83
    %v86 = vsub.f32 %v66, %v84
    %v87 = vsub.f32 %v67, %v85
    %v88 = vmul.f32 %v86, %v86
    %v89 = vmul.f32 %v87, %v87
    %v90 = vsel %vm70, %v88, 0.0
    %91 = vadd.xlane.f32.xlu0 %v90
    %v92 = vpop.xlane.xlu0 %91
    %v93 = vsel %vm70, %v89, 0.0
    %94 = vadd.xlane.f32.xlu0 %v93
    %v95 = vpop.xlane.xlu0 %94
    %v96 = vmul.f32 %v92, %v83
    %v97 = vmul.f32 %v95, %v83
    %v98 = vadd.f32 %v96, 1e-12
    %v99 = vadd.f32 %v97, 1e-12
    %v100 = vrsqrt.pop %v98
    %v101 = vmul.f32 %v100, %v98
    %v102 = vmul.f32 %v101, %v100
    %v103 = vmul.f32 0.5, %v102
    %v104 = vsub.f32 1.5, %v103
    %v105 = vmul.f32 %v100, %v104
    %vm106 = vweird.f32 %v98
    %vm107 = vweird.f32 %v100
    %vm108 = vmor %vm106, %vm107
    %v109 = vsel %vm108, %v100, %v105
    %v110 = vrsqrt.pop %v99
    %v111 = vmul.f32 %v110, %v99
    %v112 = vmul.f32 %v111, %v110
    %v113 = vmul.f32 0.5, %v112
    %v114 = vsub.f32 1.5, %v113
    %v115 = vmul.f32 %v110, %v114
    %vm116 = vweird.f32 %v99
    %vm117 = vweird.f32 %v110
    %vm118 = vmor %vm116, %vm117
    %v119 = vsel %vm118, %v110, %v115
    %v120 = vmul.f32 %v86, %v109
    %v121 = vmul.f32 %v87, %v119
    %v123 = vperm.slane %v68, 0
    %v125 = vmul.f32 %v120, %v123
    %v126 = vmul.f32 %v121, %v123
    %v128 = vperm.slane %v69, 0
    %v130 = vadd.f32 %v125, %v128
    %v131 = vadd.f32 %v126, %v128
    %v132 = vld [vmem:[%s4] sm:$0xff]
    %v133 = vld [vmem:[%s4 + $0x8] sm:$0xff]
    %v134 = vld [vmem:[%s4 + $0x10] sm:$0xff]
    %v135 = vld [vmem:[%s4 + $0x18] sm:$0xff]
    %v136 = vld [vmem:[%s5] sm:$0x1]
    %v138 = vperm.slane %v136, 0
    %v141 = vsel %vm70, %v130, 0
    %v144 = vsel %vm70, %v131, 0
    %146 = vmatpush.msra.mxu0 0.0
    %147 = vmatpush.msra.mxu0 0.0
    %148 = vmatpush.msra.mxu0 0.0
    %149 = vmatpush.msra.mxu0 0.0
    %150 = vmatpush.msra.mxu0 0.0
    %151 = vmatpush.msra.mxu0 0.0
    %152 = vmatpush.msra.mxu0 0.0
    %153 = vmatpush.msra.mxu0 0.0
    %154 = vmatpush.msra.mxu0 0.0
    %155 = vmatpush.msra.mxu0 0.0
    %156 = vmatpush.msra.mxu0 0.0
    %157 = vmatpush.msra.mxu0 0.0
    %158 = vmatpush.msra.mxu0 %v135
    %159 = vmatpush.msra.mxu0 %v134
    %160 = vmatpush.msra.mxu0 %v133
    %161 = vmatpush.msra.mxu0 %v132
    %162 = vmatmul.f32.gmra.mxu0 %v141
    %v163 = vpop.f32.mrf.mxu0
    %v164 = vadd.f32 %v138, %v163
    %165 = vmatmul.f32.gmra.mxu0 %v144
    %v166 = vpop.f32.mrf.mxu0
    %v167 = vadd.f32 %v138, %v166
    %168 = vdwg.mxu0
    %v169 = vld [vmem:[%s1] sm:$0x1]
    %171 = vrot.lane.b32.xlu0 %v164, 96
    %v172 = vpop.permute.xlu0 %171
    %vm173 = vcmask 130048
    %v174 = vsel %vm173, %v164, 0
    %v176 = vsel %vm173, %v172, 0
    %178 = vmatpush.xpose.msra.mxu0 0.0
    %179 = vmatpush.xpose.msra.mxu0 0.0
    %180 = vmatpush.xpose.msra.mxu0 0.0
    %181 = vmatpush.xpose.msra.mxu0 0.0
    %182 = vmatpush.xpose.msra.mxu0 0.0
    %183 = vmatpush.xpose.msra.mxu0 0.0
    %184 = vmatpush.xpose.msra.mxu0 0.0
    %185 = vmatpush.xpose.msra.mxu0 0.0
    %186 = vmatpush.xpose.msra.mxu0 0.0
    %187 = vmatpush.xpose.msra.mxu0 0.0
    %188 = vmatpush.xpose.msra.mxu0 0.0
    %189 = vmatpush.xpose.msra.mxu0 0.0
    %190 = vmatpush.xpose.msra.mxu0 0.0
    %191 = vmatpush.xpose.msra.mxu0 0.0
    %192 = vmatpush.xpose.msra.mxu0 0.0
    %193 = vmatpush.xpose.msra.mxu0 %v176
    %194 = vmatmul.f32.gmra.mxu0 %v174
    %v195 = vpop.f32.mrf.mxu0
    %v196 = vadd.f32 0.0, %v195
    %197 = vdwg.mxu0
    %v198 = vmul.f32 %v196, 0.25
    %v199 = vperm.slane %v169, 0
    %v200 = vadd.f32 %v198, %v199
    %vm201 = vcmask 64512
    %v202 = vsel %vm201, %v200, -inf
    %203 = vmax.xlane.f32.xlu0 %v202
    %v204 = vpop.xlane.xlu0 %203
    %v205 = vsub.f32 %v200, %v204
    %v206 = vmul.f32 %v205, 1.442695
    %v207 = vpow.pop %v206
    %v208 = vsel %vm201, %v207, 0.0
    %209 = vadd.xlane.f32.xlu0 %v208
    %v210 = vpop.xlane.xlu0 %209
    %v211 = vrcp.pop %v210
    %v212 = vmul.f32 %v207, %v211
    %213 = vrot.lane.b32.xlu0 %v164, 64
    %v214 = vpop.permute.xlu0 %213
    %v217 = vsel %vm201, %v212, 0
    %219 = vmatpush.msra.mxu0 0.0
    %220 = vmatpush.msra.mxu0 0.0
    %221 = vmatpush.msra.mxu0 0.0
    %222 = vmatpush.msra.mxu0 0.0
    %223 = vmatpush.msra.mxu0 0.0
    %224 = vmatpush.msra.mxu0 0.0
    %225 = vmatpush.msra.mxu0 0.0
    %226 = vmatpush.msra.mxu0 0.0
    %227 = vmatpush.msra.mxu0 0.0
    %228 = vmatpush.msra.mxu0 0.0
    %229 = vmatpush.msra.mxu0 0.0
    %230 = vmatpush.msra.mxu0 0.0
    %231 = vmatpush.msra.mxu0 0.0
    %232 = vmatpush.msra.mxu0 0.0
    %233 = vmatpush.msra.mxu0 0.0
    %234 = vmatpush.msra.mxu0 %v214
    %235 = vmatmul.f32.gmra.mxu0 %v217
    %v236 = vpop.f32.mrf.mxu0
    %v237 = vadd.f32 0.0, %v236
    %238 = vdwg.mxu0
    %239 = vst.msk [vmem:[#allocation2] sm:$0xff] %vm173, %v237
    %240 = vrot.lane.b32.xlu0 %v164, 112
    %v241 = vpop.permute.xlu0 %240
    %242 = vrot.lane.b32.xlu0 %v164, 80
    %v243 = vpop.permute.xlu0 %242
    %v244 = vsel %vm173, %v241, 0
    %v246 = vsel %vm173, %v243, 0
    %248 = vmatpush.xpose.msra.mxu0 0.0
    %249 = vmatpush.xpose.msra.mxu0 0.0
    %250 = vmatpush.xpose.msra.mxu0 0.0
    %251 = vmatpush.xpose.msra.mxu0 0.0
    %252 = vmatpush.xpose.msra.mxu0 0.0
    %253 = vmatpush.xpose.msra.mxu0 0.0
    %254 = vmatpush.xpose.msra.mxu0 0.0
    %255 = vmatpush.xpose.msra.mxu0 0.0
    %256 = vmatpush.xpose.msra.mxu0 0.0
    %257 = vmatpush.xpose.msra.mxu0 0.0
    %258 = vmatpush.xpose.msra.mxu0 0.0
    %259 = vmatpush.xpose.msra.mxu0 0.0
    %260 = vmatpush.xpose.msra.mxu0 0.0
    %261 = vmatpush.xpose.msra.mxu0 0.0
    %262 = vmatpush.xpose.msra.mxu0 0.0
    %263 = vmatpush.xpose.msra.mxu0 %v246
    %264 = vmatmul.f32.gmra.mxu0 %v244
    %v265 = vpop.f32.mrf.mxu0
    %v266 = vadd.f32 0.0, %v265
    %267 = vdwg.mxu0
    %v268 = vmul.f32 %v266, 0.25
    %v269 = vadd.f32 %v268, %v199
    %v270 = vsel %vm201, %v269, -inf
    %271 = vmax.xlane.f32.xlu0 %v270
    %v272 = vpop.xlane.xlu0 %271
    %v273 = vsub.f32 %v269, %v272
    %v274 = vmul.f32 %v273, 1.442695
    %v275 = vpow.pop %v274
    %v276 = vsel %vm201, %v275, 0.0
    %277 = vadd.xlane.f32.xlu0 %v276
    %v278 = vpop.xlane.xlu0 %277
    %v279 = vrcp.pop %v278
    %v280 = vmul.f32 %v275, %v279
    %281 = vrot.lane.b32.xlu0 %v164, 48
    %v282 = vpop.permute.xlu0 %281
    %v285 = vsel %vm201, %v280, 0
    %287 = vmatpush.msra.mxu0 0.0
    %288 = vmatpush.msra.mxu0 0.0
    %289 = vmatpush.msra.mxu0 0.0
    %290 = vmatpush.msra.mxu0 0.0
    %291 = vmatpush.msra.mxu0 0.0
    %292 = vmatpush.msra.mxu0 0.0
    %293 = vmatpush.msra.mxu0 0.0
    %294 = vmatpush.msra.mxu0 0.0
    %295 = vmatpush.msra.mxu0 0.0
    %296 = vmatpush.msra.mxu0 0.0
    %297 = vmatpush.msra.mxu0 0.0
    %298 = vmatpush.msra.mxu0 0.0
    %299 = vmatpush.msra.mxu0 0.0
    %300 = vmatpush.msra.mxu0 0.0
    %301 = vmatpush.msra.mxu0 0.0
    %302 = vmatpush.msra.mxu0 %v282
    %303 = vmatmul.f32.gmra.mxu0 %v285
    %v304 = vpop.f32.mrf.mxu0
    %v305 = vadd.f32 0.0, %v304
    %306 = vdwg.mxu0
    %308 = vrot.lane.b32.xlu0 %v305, 16
    %v309 = vpop.permute.xlu0 %308
    %vm311 = vcmask 261248
    %312 = vst.msk [vmem:[#allocation2] sm:$0xff] %vm311, %v309
    %v313 = vld [vmem:[%s1 + $0x1] sm:$0x1]
    %315 = vrot.lane.b32.xlu0 %v167, 96
    %v316 = vpop.permute.xlu0 %315
    %v317 = vsel %vm173, %v167, 0
    %v319 = vsel %vm173, %v316, 0
    %321 = vmatpush.xpose.msra.mxu0 0.0
    %322 = vmatpush.xpose.msra.mxu0 0.0
    %323 = vmatpush.xpose.msra.mxu0 0.0
    %324 = vmatpush.xpose.msra.mxu0 0.0
    %325 = vmatpush.xpose.msra.mxu0 0.0
    %326 = vmatpush.xpose.msra.mxu0 0.0
    %327 = vmatpush.xpose.msra.mxu0 0.0
    %328 = vmatpush.xpose.msra.mxu0 0.0
    %329 = vmatpush.xpose.msra.mxu0 0.0
    %330 = vmatpush.xpose.msra.mxu0 0.0
    %331 = vmatpush.xpose.msra.mxu0 0.0
    %332 = vmatpush.xpose.msra.mxu0 0.0
    %333 = vmatpush.xpose.msra.mxu0 0.0
    %334 = vmatpush.xpose.msra.mxu0 0.0
    %335 = vmatpush.xpose.msra.mxu0 0.0
    %336 = vmatpush.xpose.msra.mxu0 %v319
    %337 = vmatmul.f32.gmra.mxu0 %v317
    %v338 = vpop.f32.mrf.mxu0
    %v339 = vadd.f32 0.0, %v338
    %340 = vdwg.mxu0
    %v341 = vmul.f32 %v339, 0.25
    %v342 = vperm.slane %v313, 0
    %v343 = vadd.f32 %v341, %v342
    %v344 = vsel %vm201, %v343, -inf
    %345 = vmax.xlane.f32.xlu0 %v344
    %v346 = vpop.xlane.xlu0 %345
    %v347 = vsub.f32 %v343, %v346
    %v348 = vmul.f32 %v347, 1.442695
    %v349 = vpow.pop %v348
    %v350 = vsel %vm201, %v349, 0.0
    %351 = vadd.xlane.f32.xlu0 %v350
    %v352 = vpop.xlane.xlu0 %351
    %v353 = vrcp.pop %v352
    %v354 = vmul.f32 %v349, %v353
    %355 = vrot.lane.b32.xlu0 %v167, 64
    %v356 = vpop.permute.xlu0 %355
    %v359 = vsel %vm201, %v354, 0
    %361 = vmatpush.msra.mxu0 0.0
    %362 = vmatpush.msra.mxu0 0.0
    %363 = vmatpush.msra.mxu0 0.0
    %364 = vmatpush.msra.mxu0 0.0
    %365 = vmatpush.msra.mxu0 0.0
    %366 = vmatpush.msra.mxu0 0.0
    %367 = vmatpush.msra.mxu0 0.0
    %368 = vmatpush.msra.mxu0 0.0
    %369 = vmatpush.msra.mxu0 0.0
    %370 = vmatpush.msra.mxu0 0.0
    %371 = vmatpush.msra.mxu0 0.0
    %372 = vmatpush.msra.mxu0 0.0
    %373 = vmatpush.msra.mxu0 0.0
    %374 = vmatpush.msra.mxu0 0.0
    %375 = vmatpush.msra.mxu0 0.0
    %376 = vmatpush.msra.mxu0 %v356
    %377 = vmatmul.f32.gmra.mxu0 %v359
    %v378 = vpop.f32.mrf.mxu0
    %v379 = vadd.f32 0.0, %v378
    %380 = vdwg.mxu0
    %381 = vst.msk [vmem:[#allocation2 + $0x8] sm:$0xff] %vm173, %v379
    %382 = vrot.lane.b32.xlu0 %v167, 112
    %v383 = vpop.permute.xlu0 %382
    %384 = vrot.lane.b32.xlu0 %v167, 80
    %v385 = vpop.permute.xlu0 %384
    %v386 = vsel %vm173, %v383, 0
    %v388 = vsel %vm173, %v385, 0
    %390 = vmatpush.xpose.msra.mxu0 0.0
    %391 = vmatpush.xpose.msra.mxu0 0.0
    %392 = vmatpush.xpose.msra.mxu0 0.0
    %393 = vmatpush.xpose.msra.mxu0 0.0
    %394 = vmatpush.xpose.msra.mxu0 0.0
    %395 = vmatpush.xpose.msra.mxu0 0.0
    %396 = vmatpush.xpose.msra.mxu0 0.0
    %397 = vmatpush.xpose.msra.mxu0 0.0
    %398 = vmatpush.xpose.msra.mxu0 0.0
    %399 = vmatpush.xpose.msra.mxu0 0.0
    %400 = vmatpush.xpose.msra.mxu0 0.0
    %401 = vmatpush.xpose.msra.mxu0 0.0
    %402 = vmatpush.xpose.msra.mxu0 0.0
    %403 = vmatpush.xpose.msra.mxu0 0.0
    %404 = vmatpush.xpose.msra.mxu0 0.0
    %405 = vmatpush.xpose.msra.mxu0 %v388
    %406 = vmatmul.f32.gmra.mxu0 %v386
    %v407 = vpop.f32.mrf.mxu0
    %v408 = vadd.f32 0.0, %v407
    %409 = vdwg.mxu0
    %v410 = vmul.f32 %v408, 0.25
    %v411 = vadd.f32 %v410, %v342
    %v412 = vsel %vm201, %v411, -inf
    %413 = vmax.xlane.f32.xlu0 %v412
    %v414 = vpop.xlane.xlu0 %413
    %v415 = vsub.f32 %v411, %v414
    %v416 = vmul.f32 %v415, 1.442695
    %v417 = vpow.pop %v416
    %v418 = vsel %vm201, %v417, 0.0
    %419 = vadd.xlane.f32.xlu0 %v418
    %v420 = vpop.xlane.xlu0 %419
    %v421 = vrcp.pop %v420
    %v422 = vmul.f32 %v417, %v421
    %423 = vrot.lane.b32.xlu0 %v167, 48
    %v424 = vpop.permute.xlu0 %423
    %v427 = vsel %vm201, %v422, 0
    %429 = vmatpush.msra.mxu0 0.0
    %430 = vmatpush.msra.mxu0 0.0
    %431 = vmatpush.msra.mxu0 0.0
    %432 = vmatpush.msra.mxu0 0.0
    %433 = vmatpush.msra.mxu0 0.0
    %434 = vmatpush.msra.mxu0 0.0
    %435 = vmatpush.msra.mxu0 0.0
    %436 = vmatpush.msra.mxu0 0.0
    %437 = vmatpush.msra.mxu0 0.0
    %438 = vmatpush.msra.mxu0 0.0
    %439 = vmatpush.msra.mxu0 0.0
    %440 = vmatpush.msra.mxu0 0.0
    %441 = vmatpush.msra.mxu0 0.0
    %442 = vmatpush.msra.mxu0 0.0
    %443 = vmatpush.msra.mxu0 0.0
    %444 = vmatpush.msra.mxu0 %v424
    %445 = vmatmul.f32.gmra.mxu0 %v427
    %v446 = vpop.f32.mrf.mxu0
    %v447 = vadd.f32 0.0, %v446
    %448 = vdwg.mxu0
    %450 = vrot.lane.b32.xlu0 %v447, 16
    %v451 = vpop.permute.xlu0 %450
    %453 = vst.msk [vmem:[#allocation2 + $0x8] sm:$0xff] %vm311, %v451
    %v454 = vld [vmem:[#allocation2] sm:$0xff]
    %v455 = vld [vmem:[#allocation2 + $0x8] sm:$0xff]
    %v456 = vld [vmem:[%s6] sm:$0xff]
    %v457 = vld [vmem:[%s6 + $0x8] sm:$0xff]
    %v458 = vld [vmem:[%s6 + $0x10] sm:$0xff]
    %v459 = vld [vmem:[%s6 + $0x18] sm:$0xff]
    %v460 = vld [vmem:[%s7] sm:$0x1]
    %v462 = vperm.slane %v460, 0
    %v465 = vsel %vm70, %v454, 0
    %v468 = vsel %vm70, %v455, 0
    %470 = vmatpush.msra.mxu0 0.0
    %471 = vmatpush.msra.mxu0 0.0
    %472 = vmatpush.msra.mxu0 0.0
    %473 = vmatpush.msra.mxu0 0.0
    %474 = vmatpush.msra.mxu0 0.0
    %475 = vmatpush.msra.mxu0 0.0
    %476 = vmatpush.msra.mxu0 0.0
    %477 = vmatpush.msra.mxu0 0.0
    %478 = vmatpush.msra.mxu0 0.0
    %479 = vmatpush.msra.mxu0 0.0
    %480 = vmatpush.msra.mxu0 0.0
    %481 = vmatpush.msra.mxu0 0.0
    %482 = vmatpush.msra.mxu0 %v459
    %483 = vmatpush.msra.mxu0 %v458
    %484 = vmatpush.msra.mxu0 %v457
    %485 = vmatpush.msra.mxu0 %v456
    %486 = vmatmul.f32.gmra.mxu0 %v465
    %v487 = vpop.f32.mrf.mxu0
    %v488 = vadd.f32 %v462, %v487
    %489 = vmatmul.f32.gmra.mxu0 %v468
    %v490 = vpop.f32.mrf.mxu0
    %v491 = vadd.f32 %v462, %v490
    %492 = vdwg.mxu0
    %v493 = vadd.f32 %v488, %v130
    %v494 = vadd.f32 %v491, %v131
    %v495 = vld [vmem:[%s8] sm:$0x1]
    %v496 = vld [vmem:[%s9] sm:$0x1]
    %v497 = vsel %vm70, %v493, 0.0
    %498 = vadd.xlane.f32.xlu0 %v497
    %v499 = vpop.xlane.xlu0 %498
    %v500 = vsel %vm70, %v494, 0.0
    %501 = vadd.xlane.f32.xlu0 %v500
    %v502 = vpop.xlane.xlu0 %501
    %v503 = vmul.f32 %v499, %v83
    %v504 = vmul.f32 %v502, %v83
    %v505 = vsub.f32 %v493, %v503
    %v506 = vsub.f32 %v494, %v504
    %v507 = vmul.f32 %v505, %v505
    %v508 = vmul.f32 %v506, %v506
    %v509 = vsel %vm70, %v507, 0.0
    %510 = vadd.xlane.f32.xlu0 %v509
    %v511 = vpop.xlane.xlu0 %510
    %v512 = vsel %vm70, %v508, 0.0
    %513 = vadd.xlane.f32.xlu0 %v512
    %v514 = vpop.xlane.xlu0 %513
    %v515 = vmul.f32 %v511, %v83
    %v516 = vmul.f32 %v514, %v83
    %v517 = vadd.f32 %v515, 1e-12
    %v518 = vadd.f32 %v516, 1e-12
    %v519 = vrsqrt.pop %v517
    %v520 = vmul.f32 %v519, %v517
    %v521 = vmul.f32 %v520, %v519
    %v522 = vmul.f32 0.5, %v521
    %v523 = vsub.f32 1.5, %v522
    %v524 = vmul.f32 %v519, %v523
    %vm525 = vweird.f32 %v517
    %vm526 = vweird.f32 %v519
    %vm527 = vmor %vm525, %vm526
    %v528 = vsel %vm527, %v519, %v524
    %v529 = vrsqrt.pop %v518
    %v530 = vmul.f32 %v529, %v518
    %v531 = vmul.f32 %v530, %v529
    %v532 = vmul.f32 0.5, %v531
    %v533 = vsub.f32 1.5, %v532
    %v534 = vmul.f32 %v529, %v533
    %vm535 = vweird.f32 %v518
    %vm536 = vweird.f32 %v529
    %vm537 = vmor %vm535, %vm536
    %v538 = vsel %vm537, %v529, %v534
    %v539 = vmul.f32 %v505, %v528
    %v540 = vmul.f32 %v506, %v538
    %v542 = vperm.slane %v495, 0
    %v544 = vmul.f32 %v539, %v542
    %v545 = vmul.f32 %v540, %v542
    %v547 = vperm.slane %v496, 0
    %v549 = vadd.f32 %v544, %v547
    %v550 = vadd.f32 %v545, %v547
    %v551 = vld [vmem:[%s10] sm:$0xff]
    %v552 = vld [vmem:[%s10 + $0x8] sm:$0xff]
    %v553 = vld [vmem:[%s10 + $0x10] sm:$0xff]
    %v554 = vld [vmem:[%s10 + $0x18] sm:$0xff]
    %v555 = vld [vmem:[%s11] sm:$0x1]
    %v557 = vperm.slane %v555, 0
    %v560 = vsel %vm70, %v549, 0
    %v563 = vsel %vm70, %v550, 0
    %565 = vmatpush.msra.mxu0 0.0
    %566 = vmatpush.msra.mxu0 0.0
    %567 = vmatpush.msra.mxu0 0.0
    %568 = vmatpush.msra.mxu0 0.0
    %569 = vmatpush.msra.mxu0 0.0
    %570 = vmatpush.msra.mxu0 0.0
    %571 = vmatpush.msra.mxu0 0.0
    %572 = vmatpush.msra.mxu0 0.0
    %573 = vmatpush.msra.mxu0 0.0
    %574 = vmatpush.msra.mxu0 0.0
    %575 = vmatpush.msra.mxu0 0.0
    %576 = vmatpush.msra.mxu0 0.0
    %577 = vmatpush.msra.mxu0 %v554
    %578 = vmatpush.msra.mxu0 %v553
    %579 = vmatpush.msra.mxu0 %v552
    %580 = vmatpush.msra.mxu0 %v551
    %581 = vmatmul.f32.gmra.mxu0 %v560
    %v582 = vpop.f32.mrf.mxu0
    %v583 = vadd.f32 %v557, %v582
    %584 = vmatmul.f32.gmra.mxu0 %v563
    %v585 = vpop.f32.mrf.mxu0
    %v586 = vadd.f32 %v557, %v585
    %587 = vdwg.mxu0
    %v588 = vmul.f32 %v583, %v583
    %v589 = vmul.f32 %v586, %v586
    %v590 = vmul.f32 %v583, %v588
    %v591 = vmul.f32 %v586, %v589
    %v592 = vmul.f32 %v590, 0.044715
    %v593 = vmul.f32 %v591, 0.044715
    %v594 = vadd.f32 %v583, %v592
    %v595 = vadd.f32 %v586, %v593
    %v596 = vmul.f32 %v594, 0.7978846
    %v597 = vmul.f32 %v595, 0.7978846
    %v598 = vtanh.pop %v596
    %v599 = vtanh.pop %v597
    %v600 = vadd.f32 %v598, 1.0
    %v601 = vadd.f32 %v599, 1.0
    %v602 = vmul.f32 %v600, 0.5
    %v603 = vmul.f32 %v601, 0.5
    %v604 = vmul.f32 %v583, %v602
    %v605 = vmul.f32 %v586, %v603
    %v606 = vld [vmem:[%s12] sm:$0xff]
    %v607 = vld [vmem:[%s12 + $0x8] sm:$0xff]
    %v608 = vld [vmem:[%s12 + $0x10] sm:$0xff]
    %v609 = vld [vmem:[%s12 + $0x18] sm:$0xff]
    %v610 = vld [vmem:[%s12 + $0x20] sm:$0xff]
    %v611 = vld [vmem:[%s12 + $0x28] sm:$0xff]
    %v612 = vld [vmem:[%s12 + $0x30] sm:$0xff]
    %v613 = vld [vmem:[%s12 + $0x38] sm:$0xff]
    %v614 = vld [vmem:[%s13] sm:$0x1]
    %v616 = vperm.slane %v614, 0
    %vm618 = vcmask 523264
    %v620 = vsel %vm618, %v604, 0
    %v623 = vsel %vm618, %v605, 0
    %625 = vmatpush.msra.mxu0 0.0
    %626 = vmatpush.msra.mxu0 0.0
    %627 = vmatpush.msra.mxu0 0.0
    %628 = vmatpush.msra.mxu0 0.0
    %629 = vmatpush.msra.mxu0 0.0
    %630 = vmatpush.msra.mxu0 0.0
    %631 = vmatpush.msra.mxu0 0.0
    %632 = vmatpush.msra.mxu0 0.0
    %633 = vmatpush.msra.mxu0 %v613
    %634 = vmatpush.msra.mxu0 %v612
    %635 = vmatpush.msra.mxu0 %v611
    %636 = vmatpush.msra.mxu0 %v610
    %637 = vmatpush.msra.mxu0 %v609
    %638 = vmatpush.msra.mxu0 %v608
    %639 = vmatpush.msra.mxu0 %v607
    %640 = vmatpush.msra.mxu0 %v606
    %641 = vmatmul.f32.gmra.mxu0 %v620
    %v642 = vpop.f32.mrf.mxu0
    %v643 = vadd.f32 %v616, %v642
    %644 = vmatmul.f32.gmra.mxu0 %v623
    %v645 = vpop.f32.mrf.mxu0
    %v646 = vadd.f32 %v616, %v645
    %647 = vdwg.mxu0
    %v648 = vadd.f32 %v643, %v549
    %v649 = vadd.f32 %v646, %v550
    %v650 = vld [vmem:[%s14] sm:$0x1]
    %v651 = vld [vmem:[%s15] sm:$0x1]
    %v652 = vsel %vm70, %v648, 0.0
    %653 = vadd.xlane.f32.xlu0 %v652
    %v654 = vpop.xlane.xlu0 %653
    %v655 = vsel %vm70, %v649, 0.0
    %656 = vadd.xlane.f32.xlu0 %v655
    %v657 = vpop.xlane.xlu0 %656
    %v658 = vmul.f32 %v654, %v83
    %v659 = vmul.f32 %v657, %v83
    %v660 = vsub.f32 %v648, %v658
    %v661 = vsub.f32 %v649, %v659
    %v662 = vmul.f32 %v660, %v660
    %v663 = vmul.f32 %v661, %v661
    %v664 = vsel %vm70, %v662, 0.0
    %665 = vadd.xlane.f32.xlu0 %v664
    %v666 = vpop.xlane.xlu0 %665
    %v667 = vsel %vm70, %v663, 0.0
    %668 = vadd.xlane.f32.xlu0 %v667
    %v669 = vpop.xlane.xlu0 %668
    %v670 = vmul.f32 %v666, %v83
    %v671 = vmul.f32 %v669, %v83
    %v672 = vadd.f32 %v670, 1e-12
    %v673 = vadd.f32 %v671, 1e-12
    %v674 = vrsqrt.pop %v672
    %v675 = vmul.f32 %v674, %v672
    %v676 = vmul.f32 %v675, %v674
    %v677 = vmul.f32 0.5, %v676
    %v678 = vsub.f32 1.5, %v677
    %v679 = vmul.f32 %v674, %v678
    %vm680 = vweird.f32 %v672
    %vm681 = vweird.f32 %v674
    %vm682 = vmor %vm680, %vm681
    %v683 = vsel %vm682, %v674, %v679
    %v684 = vrsqrt.pop %v673
    %v685 = vmul.f32 %v684, %v673
    %v686 = vmul.f32 %v685, %v684
    %v687 = vmul.f32 0.5, %v686
    %v688 = vsub.f32 1.5, %v687
    %v689 = vmul.f32 %v684, %v688
    %vm690 = vweird.f32 %v673
    %vm691 = vweird.f32 %v684
    %vm692 = vmor %vm690, %vm691
    %v693 = vsel %vm692, %v684, %v689
    %v694 = vmul.f32 %v660, %v683
    %v695 = vmul.f32 %v661, %v693
    %v697 = vperm.slane %v650, 0
    %v699 = vmul.f32 %v694, %v697
    %v700 = vmul.f32 %v695, %v697
    %v702 = vperm.slane %v651, 0
    %v704 = vadd.f32 %v699, %v702
    %v705 = vadd.f32 %v700, %v702
    %s706 = scalar_lea.vmem %s4, 32
    %v707 = vld [vmem:[%s706] sm:$0xff]
    %v708 = vld [vmem:[%s706 + $0x8] sm:$0xff]
    %v709 = vld [vmem:[%s706 + $0x10] sm:$0xff]
    %v710 = vld [vmem:[%s706 + $0x18] sm:$0xff]
    %s711 = scalar_lea.vmem %s5, 1
    %v712 = vld [vmem:[%s711] sm:$0x1]
    %v714 = vperm.slane %v712, 0
    %v717 = vsel %vm70, %v704, 0
    %v720 = vsel %vm70, %v705, 0
    %722 = vmatpush.msra.mxu0 0.0
    %723 = vmatpush.msra.mxu0 0.0
    %724 = vmatpush.msra.mxu0 0.0
    %725 = vmatpush.msra.mxu0 0.0
    %726 = vmatpush.msra.mxu0 0.0
    %727 = vmatpush.msra.mxu0 0.0
    %728 = vmatpush.msra.mxu0 0.0
    %729 = vmatpush.msra.mxu0 0.0
    %730 = vmatpush.msra.mxu0 0.0
    %731 = vmatpush.msra.mxu0 0.0
    %732 = vmatpush.msra.mxu0 0.0
    %733 = vmatpush.msra.mxu0 0.0
    %734 = vmatpush.msra.mxu0 %v710
    %735 = vmatpush.msra.mxu0 %v709
    %736 = vmatpush.msra.mxu0 %v708
    %737 = vmatpush.msra.mxu0 %v707
    %738 = vmatmul.f32.gmra.mxu0 %v717
    %v739 = vpop.f32.mrf.mxu0
    %v740 = vadd.f32 %v714, %v739
    %741 = vmatmul.f32.gmra.mxu0 %v720
    %v742 = vpop.f32.mrf.mxu0
    %v743 = vadd.f32 %v714, %v742
    %744 = vdwg.mxu0
    %v745 = vld [vmem:[%s1] sm:$0x1]
    %747 = vrot.lane.b32.xlu0 %v740, 96
    %v748 = vpop.permute.xlu0 %747
    %v749 = vsel %vm173, %v740, 0
    %v751 = vsel %vm173, %v748, 0
    %753 = vmatpush.xpose.msra.mxu0 0.0
    %754 = vmatpush.xpose.msra.mxu0 0.0
    %755 = vmatpush.xpose.msra.mxu0 0.0
    %756 = vmatpush.xpose.msra.mxu0 0.0
    %757 = vmatpush.xpose.msra.mxu0 0.0
    %758 = vmatpush.xpose.msra.mxu0 0.0
    %759 = vmatpush.xpose.msra.mxu0 0.0
    %760 = vmatpush.xpose.msra.mxu0 0.0
    %761 = vmatpush.xpose.msra.mxu0 0.0
    %762 = vmatpush.xpose.msra.mxu0 0.0
    %763 = vmatpush.xpose.msra.mxu0 0.0
    %764 = vmatpush.xpose.msra.mxu0 0.0
    %765 = vmatpush.xpose.msra.mxu0 0.0
    %766 = vmatpush.xpose.msra.mxu0 0.0
    %767 = vmatpush.xpose.msra.mxu0 0.0
    %768 = vmatpush.xpose.msra.mxu0 %v751
    %769 = vmatmul.f32.gmra.mxu0 %v749
    %v770 = vpop.f32.mrf.mxu0
    %v771 = vadd.f32 0.0, %v770
    %772 = vdwg.mxu0
    %v773 = vmul.f32 %v771, 0.25
    %v774 = vperm.slane %v745, 0
    %v775 = vadd.f32 %v773, %v774
    %v776 = vsel %vm201, %v775, -inf
    %777 = vmax.xlane.f32.xlu0 %v776
    %v778 = vpop.xlane.xlu0 %777
    %v779 = vsub.f32 %v775, %v778
    %v780 = vmul.f32 %v779, 1.442695
    %v781 = vpow.pop %v780
    %v782 = vsel %vm201, %v781, 0.0
    %783 = vadd.xlane.f32.xlu0 %v782
    %v784 = vpop.xlane.xlu0 %783
    %v785 = vrcp.pop %v784
    %v786 = vmul.f32 %v781, %v785
    %787 = vrot.lane.b32.xlu0 %v740, 64
    %v788 = vpop.permute.xlu0 %787
    %v791 = vsel %vm201, %v786, 0
    %793 = vmatpush.msra.mxu0 0.0
    %794 = vmatpush.msra.mxu0 0.0
    %795 = vmatpush.msra.mxu0 0.0
    %796 = vmatpush.msra.mxu0 0.0
    %797 = vmatpush.msra.mxu0 0.0
    %798 = vmatpush.msra.mxu0 0.0
    %799 = vmatpush.msra.mxu0 0.0
    %800 = vmatpush.msra.mxu0 0.0
    %801 = vmatpush.msra.mxu0 0.0
    %802 = vmatpush.msra.mxu0 0.0
    %803 = vmatpush.msra.mxu0 0.0
    %804 = vmatpush.msra.mxu0 0.0
    %805 = vmatpush.msra.mxu0 0.0
    %806 = vmatpush.msra.mxu0 0.0
    %807 = vmatpush.msra.mxu0 0.0
    %808 = vmatpush.msra.mxu0 %v788
    %809 = vmatmul.f32.gmra.mxu0 %v791
    %v810 = vpop.f32.mrf.mxu0
    %v811 = vadd.f32 0.0, %v810
    %812 = vdwg.mxu0
    %813 = vst.msk [vmem:[#allocation2] sm:$0xff] %vm173, %v811
    %814 = vrot.lane.b32.xlu0 %v740, 112
    %v815 = vpop.permute.xlu0 %814
    %816 = vrot.lane.b32.xlu0 %v740, 80
    %v817 = vpop.permute.xlu0 %816
    %v818 = vsel %vm173, %v815, 0
    %v820 = vsel %vm173, %v817, 0
    %822 = vmatpush.xpose.msra.mxu0 0.0
    %823 = vmatpush.xpose.msra.mxu0 0.0
    %824 = vmatpush.xpose.msra.mxu0 0.0
    %825 = vmatpush.xpose.msra.mxu0 0.0
    %826 = vmatpush.xpose.msra.mxu0 0.0
    %827 = vmatpush.xpose.msra.mxu0 0.0
    %828 = vmatpush.xpose.msra.mxu0 0.0
    %829 = vmatpush.xpose.msra.mxu0 0.0
    %830 = vmatpush.xpose.msra.mxu0 0.0
    %831 = vmatpush.xpose.msra.mxu0 0.0
    %832 = vmatpush.xpose.msra.mxu0 0.0
    %833 = vmatpush.xpose.msra.mxu0 0.0
    %834 = vmatpush.xpose.msra.mxu0 0.0
    %835 = vmatpush.xpose.msra.mxu0 0.0
    %836 = vmatpush.xpose.msra.mxu0 0.0
    %837 = vmatpush.xpose.msra.mxu0 %v820
    %838 = vmatmul.f32.gmra.mxu0 %v818
    %v839 = vpop.f32.mrf.mxu0
    %v840 = vadd.f32 0.0, %v839
    %841 = vdwg.mxu0
    %v842 = vmul.f32 %v840, 0.25
    %v843 = vadd.f32 %v842, %v774
    %v844 = vsel %vm201, %v843, -inf
    %845 = vmax.xlane.f32.xlu0 %v844
    %v846 = vpop.xlane.xlu0 %845
    %v847 = vsub.f32 %v843, %v846
    %v848 = vmul.f32 %v847, 1.442695
    %v849 = vpow.pop %v848
    %v850 = vsel %vm201, %v849, 0.0
    %851 = vadd.xlane.f32.xlu0 %v850
    %v852 = vpop.xlane.xlu0 %851
    %v853 = vrcp.pop %v852
    %v854 = vmul.f32 %v849, %v853
    %855 = vrot.lane.b32.xlu0 %v740, 48
    %v856 = vpop.permute.xlu0 %855
    %v859 = vsel %vm201, %v854, 0
    %861 = vmatpush.msra.mxu0 0.0
    %862 = vmatpush.msra.mxu0 0.0
    %863 = vmatpush.msra.mxu0 0.0
    %864 = vmatpush.msra.mxu0 0.0
    %865 = vmatpush.msra.mxu0 0.0
    %866 = vmatpush.msra.mxu0 0.0
    %867 = vmatpush.msra.mxu0 0.0
    %868 = vmatpush.msra.mxu0 0.0
    %869 = vmatpush.msra.mxu0 0.0
    %870 = vmatpush.msra.mxu0 0.0
    %871 = vmatpush.msra.mxu0 0.0
    %872 = vmatpush.msra.mxu0 0.0
    %873 = vmatpush.msra.mxu0 0.0
    %874 = vmatpush.msra.mxu0 0.0
    %875 = vmatpush.msra.mxu0 0.0
    %876 = vmatpush.msra.mxu0 %v856
    %877 = vmatmul.f32.gmra.mxu0 %v859
    %v878 = vpop.f32.mrf.mxu0
    %v879 = vadd.f32 0.0, %v878
    %880 = vdwg.mxu0
    %882 = vrot.lane.b32.xlu0 %v879, 16
    %v883 = vpop.permute.xlu0 %882
    %885 = vst.msk [vmem:[#allocation2] sm:$0xff] %vm311, %v883
    %v886 = vld [vmem:[%s1 + $0x1] sm:$0x1]
    %888 = vrot.lane.b32.xlu0 %v743, 96
    %v889 = vpop.permute.xlu0 %888
    %v890 = vsel %vm173, %v743, 0
    %v892 = vsel %vm173, %v889, 0
    %894 = vmatpush.xpose.msra.mxu0 0.0
    %895 = vmatpush.xpose.msra.mxu0 0.0
    %896 = vmatpush.xpose.msra.mxu0 0.0
    %897 = vmatpush.xpose.msra.mxu0 0.0
    %898 = vmatpush.xpose.msra.mxu0 0.0
    %899 = vmatpush.xpose.msra.mxu0 0.0
    %900 = vmatpush.xpose.msra.mxu0 0.0
    %901 = vmatpush.xpose.msra.mxu0 0.0
    %902 = vmatpush.xpose.msra.mxu0 0.0
    %903 = vmatpush.xpose.msra.mxu0 0.0
    %904 = vmatpush.xpose.msra.mxu0 0.0
    %905 = vmatpush.xpose.msra.mxu0 0.0
    %906 = vmatpush.xpose.msra.mxu0 0.0
    %907 = vmatpush.xpose.msra.mxu0 0.0
    %908 = vmatpush.xpose.msra.mxu0 0.0
    %909 = vmatpush.xpose.msra.mxu0 %v892
    %910 = vmatmul.f32.gmra.mxu0 %v890
    %v911 = vpop.f32.mrf.mxu0
    %v912 = vadd.f32 0.0, %v911
    %913 = vdwg.mxu0
    %v914 = vmul.f32 %v912, 0.25
    %v915 = vperm.slane %v886, 0
    %v916 = vadd.f32 %v914, %v915
    %v917 = vsel %vm201, %v916, -inf
    %918 = vmax.xlane.f32.xlu0 %v917
    %v919 = vpop.xlane.xlu0 %918
    %v920 = vsub.f32 %v916, %v919
    %v921 = vmul.f32 %v920, 1.442695
    %v922 = vpow.pop %v921
    %v923 = vsel %vm201, %v922, 0.0
    %924 = vadd.xlane.f32.xlu0 %v923
    %v925 = vpop.xlane.xlu0 %924
    %v926 = vrcp.pop %v925
    %v927 = vmul.f32 %v922, %v926
    %928 = vrot.lane.b32.xlu0 %v743, 64
    %v929 = vpop.permute.xlu0 %928
    %v932 = vsel %vm201, %v927, 0
    %934 = vmatpush.msra.mxu0 0.0
    %935 = vmatpush.msra.mxu0 0.0
    %936 = vmatpush.msra.mxu0 0.0
    %937 = vmatpush.msra.mxu0 0.0
    %938 = vmatpush.msra.mxu0 0.0
    %939 = vmatpush.msra.mxu0 0.0
    %940 = vmatpush.msra.mxu0 0.0
    %941 = vmatpush.msra.mxu0 0.0
    %942 = vmatpush.msra.mxu0 0.0
    %943 = vmatpush.msra.mxu0 0.0
    %944 = vmatpush.msra.mxu0 0.0
    %945 = vmatpush.msra.mxu0 0.0
    %946 = vmatpush.msra.mxu0 0.0
    %947 = vmatpush.msra.mxu0 0.0
    %948 = vmatpush.msra.mxu0 0.0
    %949 = vmatpush.msra.mxu0 %v929
    %950 = vmatmul.f32.gmra.mxu0 %v932
    %v951 = vpop.f32.mrf.mxu0
    %v952 = vadd.f32 0.0, %v951
    %953 = vdwg.mxu0
    %954 = vst.msk [vmem:[#allocation2 + $0x8] sm:$0xff] %vm173, %v952
    %955 = vrot.lane.b32.xlu0 %v743, 112
    %v956 = vpop.permute.xlu0 %955
    %957 = vrot.lane.b32.xlu0 %v743, 80
    %v958 = vpop.permute.xlu0 %957
    %v959 = vsel %vm173, %v956, 0
    %v961 = vsel %vm173, %v958, 0
    %963 = vmatpush.xpose.msra.mxu0 0.0
    %964 = vmatpush.xpose.msra.mxu0 0.0
    %965 = vmatpush.xpose.msra.mxu0 0.0
    %966 = vmatpush.xpose.msra.mxu0 0.0
    %967 = vmatpush.xpose.msra.mxu0 0.0
    %968 = vmatpush.xpose.msra.mxu0 0.0
    %969 = vmatpush.xpose.msra.mxu0 0.0
    %970 = vmatpush.xpose.msra.mxu0 0.0
    %971 = vmatpush.xpose.msra.mxu0 0.0
    %972 = vmatpush.xpose.msra.mxu0 0.0
    %973 = vmatpush.xpose.msra.mxu0 0.0
    %974 = vmatpush.xpose.msra.mxu0 0.0
    %975 = vmatpush.xpose.msra.mxu0 0.0
    %976 = vmatpush.xpose.msra.mxu0 0.0
    %977 = vmatpush.xpose.msra.mxu0 0.0
    %978 = vmatpush.xpose.msra.mxu0 %v961
    %979 = vmatmul.f32.gmra.mxu0 %v959
    %v980 = vpop.f32.mrf.mxu0
    %v981 = vadd.f32 0.0, %v980
    %982 = vdwg.mxu0
    %v983 = vmul.f32 %v981, 0.25
    %v984 = vadd.f32 %v983, %v915
    %v985 = vsel %vm201, %v984, -inf
    %986 = vmax.xlane.f32.xlu0 %v985
    %v987 = vpop.xlane.xlu0 %986
    %v988 = vsub.f32 %v984, %v987
    %v989 = vmul.f32 %v988, 1.442695
    %v990 = vpow.pop %v989
    %v991 = vsel %vm201, %v990, 0.0
    %992 = vadd.xlane.f32.xlu0 %v991
    %v993 = vpop.xlane.xlu0 %992
    %v994 = vrcp.pop %v993
    %v995 = vmul.f32 %v990, %v994
    %996 = vrot.lane.b32.xlu0 %v743, 48
    %v997 = vpop.permute.xlu0 %996
    %v1000 = vsel %vm201, %v995, 0
    %1002 = vmatpush.msra.mxu0 0.0
    %1003 = vmatpush.msra.mxu0 0.0
    %1004 = vmatpush.msra.mxu0 0.0
    %1005 = vmatpush.msra.mxu0 0.0
    %1006 = vmatpush.msra.mxu0 0.0
    %1007 = vmatpush.msra.mxu0 0.0
    %1008 = vmatpush.msra.mxu0 0.0
    %1009 = vmatpush.msra.mxu0 0.0
    %1010 = vmatpush.msra.mxu0 0.0
    %1011 = vmatpush.msra.mxu0 0.0
    %1012 = vmatpush.msra.mxu0 0.0
    %1013 = vmatpush.msra.mxu0 0.0
    %1014 = vmatpush.msra.mxu0 0.0
    %1015 = vmatpush.msra.mxu0 0.0
    %1016 = vmatpush.msra.mxu0 0.0
    %1017 = vmatpush.msra.mxu0 %v997
    %1018 = vmatmul.f32.gmra.mxu0 %v1000
    %v1019 = vpop.f32.mrf.mxu0
    %v1020 = vadd.f32 0.0, %v1019
    %1021 = vdwg.mxu0
    %1023 = vrot.lane.b32.xlu0 %v1020, 16
    %v1024 = vpop.permute.xlu0 %1023
    %1026 = vst.msk [vmem:[#allocation2 + $0x8] sm:$0xff] %vm311, %v1024
    %v1027 = vld [vmem:[#allocation2] sm:$0xff]
    %v1028 = vld [vmem:[#allocation2 + $0x8] sm:$0xff]
    %s1029 = scalar_lea.vmem %s6, 32
    %v1030 = vld [vmem:[%s1029] sm:$0xff]
    %v1031 = vld [vmem:[%s1029 + $0x8] sm:$0xff]
    %v1032 = vld [vmem:[%s1029 + $0x10] sm:$0xff]
    %v1033 = vld [vmem:[%s1029 + $0x18] sm:$0xff]
    %s1034 = scalar_lea.vmem %s7, 1
    %v1035 = vld [vmem:[%s1034] sm:$0x1]
    %v1037 = vperm.slane %v1035, 0
    %v1040 = vsel %vm70, %v1027, 0
    %v1043 = vsel %vm70, %v1028, 0
    %1045 = vmatpush.msra.mxu0 0.0
    %1046 = vmatpush.msra.mxu0 0.0
    %1047 = vmatpush.msra.mxu0 0.0
    %1048 = vmatpush.msra.mxu0 0.0
    %1049 = vmatpush.msra.mxu0 0.0
    %1050 = vmatpush.msra.mxu0 0.0
    %1051 = vmatpush.msra.mxu0 0.0
    %1052 = vmatpush.msra.mxu0 0.0
    %1053 = vmatpush.msra.mxu0 0.0
    %1054 = vmatpush.msra.mxu0 0.0
    %1055 = vmatpush.msra.mxu0 0.0
    %1056 = vmatpush.msra.mxu0 0.0
    %1057 = vmatpush.msra.mxu0 %v1033
    %1058 = vmatpush.msra.mxu0 %v1032
    %1059 = vmatpush.msra.mxu0 %v1031
    %1060 = vmatpush.msra.mxu0 %v1030
    %1061 = vmatmul.f32.gmra.mxu0 %v1040
    %v1062 = vpop.f32.mrf.mxu0
    %v1063 = vadd.f32 %v1037, %v1062
    %1064 = vmatmul.f32.gmra.mxu0 %v1043
    %v1065 = vpop.f32.mrf.mxu0
    %v1066 = vadd.f32 %v1037, %v1065
    %1067 = vdwg.mxu0
    %v1068 = vadd.f32 %v1063, %v704
    %v1069 = vadd.f32 %v1066, %v705
    %s1070 = scalar_lea.vmem %s8, 1
    %v1071 = vld [vmem:[%s1070] sm:$0x1]
    %s1072 = scalar_lea.vmem %s9, 1
    %v1073 = vld [vmem:[%s1072] sm:$0x1]
    %v1074 = vsel %vm70, %v1068, 0.0
    %1075 = vadd.xlane.f32.xlu0 %v1074
    %v1076 = vpop.xlane.xlu0 %1075
    %v1077 = vsel %vm70, %v1069, 0.0
    %1078 = vadd.xlane.f32.xlu0 %v1077
    %v1079 = vpop.xlane.xlu0 %1078
    %v1080 = vmul.f32 %v1076, %v83
    %v1081 = vmul.f32 %v1079, %v83
    %v1082 = vsub.f32 %v1068, %v1080
    %v1083 = vsub.f32 %v1069, %v1081
    %v1084 = vmul.f32 %v1082, %v1082
    %v1085 = vmul.f32 %v1083, %v1083
    %v1086 = vsel %vm70, %v1084, 0.0
    %1087 = vadd.xlane.f32.xlu0 %v1086
    %v1088 = vpop.xlane.xlu0 %1087
    %v1089 = vsel %vm70, %v1085, 0.0
    %1090 = vadd.xlane.f32.xlu0 %v1089
    %v1091 = vpop.xlane.xlu0 %1090
    %v1092 = vmul.f32 %v1088, %v83
    %v1093 = vmul.f32 %v1091, %v83
    %v1094 = vadd.f32 %v1092, 1e-12
    %v1095 = vadd.f32 %v1093, 1e-12
    %v1096 = vrsqrt.pop %v1094
    %v1097 = vmul.f32 %v1096, %v1094
    %v1098 = vmul.f32 %v1097, %v1096
    %v1099 = vmul.f32 0.5, %v1098
    %v1100 = vsub.f32 1.5, %v1099
    %v1101 = vmul.f32 %v1096, %v1100
    %vm1102 = vweird.f32 %v1094
    %vm1103 = vweird.f32 %v1096
    %vm1104 = vmor %vm1102, %vm1103
    %v1105 = vsel %vm1104, %v1096, %v1101
    %v1106 = vrsqrt.pop %v1095
    %v1107 = vmul.f32 %v1106, %v1095
    %v1108 = vmul.f32 %v1107, %v1106
    %v1109 = vmul.f32 0.5, %v1108
    %v1110 = vsub.f32 1.5, %v1109
    %v1111 = vmul.f32 %v1106, %v1110
    %vm1112 = vweird.f32 %v1095
    %vm1113 = vweird.f32 %v1106
    %vm1114 = vmor %vm1112, %vm1113
    %v1115 = vsel %vm1114, %v1106, %v1111
    %v1116 = vmul.f32 %v1082, %v1105
    %v1117 = vmul.f32 %v1083, %v1115
    %v1119 = vperm.slane %v1071, 0
    %v1121 = vmul.f32 %v1116, %v1119
    %v1122 = vmul.f32 %v1117, %v1119
    %v1124 = vperm.slane %v1073, 0
    %v1126 = vadd.f32 %v1121, %v1124
    %v1127 = vadd.f32 %v1122, %v1124
    %s1128 = scalar_lea.vmem %s10, 32
    %v1129 = vld [vmem:[%s1128] sm:$0xff]
    %v1130 = vld [vmem:[%s1128 + $0x8] sm:$0xff]
    %v1131 = vld [vmem:[%s1128 + $0x10] sm:$0xff]
    %v1132 = vld [vmem:[%s1128 + $0x18] sm:$0xff]
    %s1133 = scalar_lea.vmem %s11, 1
    %v1134 = vld [vmem:[%s1133] sm:$0x1]
    %v1136 = vperm.slane %v1134, 0
    %v1139 = vsel %vm70, %v1126, 0
    %v1142 = vsel %vm70, %v1127, 0
    %1144 = vmatpush.msra.mxu0 0.0
    %1145 = vmatpush.msra.mxu0 0.0
    %1146 = vmatpush.msra.mxu0 0.0
    %1147 = vmatpush.msra.mxu0 0.0
    %1148 = vmatpush.msra.mxu0 0.0
    %1149 = vmatpush.msra.mxu0 0.0
    %1150 = vmatpush.msra.mxu0 0.0
    %1151 = vmatpush.msra.mxu0 0.0
    %1152 = vmatpush.msra.mxu0 0.0
    %1153 = vmatpush.msra.mxu0 0.0
    %1154 = vmatpush.msra.mxu0 0.0
    %1155 = vmatpush.msra.mxu0 0.0
    %1156 = vmatpush.msra.mxu0 %v1132
    %1157 = vmatpush.msra.mxu0 %v1131
    %1158 = vmatpush.msra.mxu0 %v1130
    %1159 = vmatpush.msra.mxu0 %v1129
    %1160 = vmatmul.f32.gmra.mxu0 %v1139
    %v1161 = vpop.f32.mrf.mxu0
    %v1162 = vadd.f32 %v1136, %v1161
    %1163 = vmatmul.f32.gmra.mxu0 %v1142
    %v1164 = vpop.f32.mrf.mxu0
    %v1165 = vadd.f32 %v1136, %v1164
    %1166 = vdwg.mxu0
    %v1167 = vmul.f32 %v1162, %v1162
    %v1168 = vmul.f32 %v1165, %v1165
    %v1169 = vmul.f32 %v1162, %v1167
    %v1170 = vmul.f32 %v1165, %v1168
    %v1171 = vmul.f32 %v1169, 0.044715
    %v1172 = vmul.f32 %v1170, 0.044715
    %v1173 = vadd.f32 %v1162, %v1171
    %v1174 = vadd.f32 %v1165, %v1172
    %v1175 = vmul.f32 %v1173, 0.7978846
    %v1176 = vmul.f32 %v1174, 0.7978846
    %v1177 = vtanh.pop %v1175
    %v1178 = vtanh.pop %v1176
    %v1179 = vadd.f32 %v1177, 1.0
    %v1180 = vadd.f32 %v1178, 1.0
    %v1181 = vmul.f32 %v1179, 0.5
    %v1182 = vmul.f32 %v1180, 0.5
    %v1183 = vmul.f32 %v1162, %v1181
    %v1184 = vmul.f32 %v1165, %v1182
    %s1185 = scalar_lea.vmem %s12, 64
    %v1186 = vld [vmem:[%s1185] sm:$0xff]
    %v1187 = vld [vmem:[%s1185 + $0x8] sm:$0xff]
    %v1188 = vld [vmem:[%s1185 + $0x10] sm:$0xff]
    %v1189 = vld [vmem:[%s1185 + $0x18] sm:$0xff]
    %v1190 = vld [vmem:[%s1185 + $0x20] sm:$0xff]
    %v1191 = vld [vmem:[%s1185 + $0x28] sm:$0xff]
    %v1192 = vld [vmem:[%s1185 + $0x30] sm:$0xff]
    %v1193 = vld [vmem:[%s1185 + $0x38] sm:$0xff]
    %s1194 = scalar_lea.vmem %s13, 1
    %v1195 = vld [vmem:[%s1194] sm:$0x1]
    %v1197 = vperm.slane %v1195, 0
    %v1200 = vsel %vm618, %v1183, 0
    %v1203 = vsel %vm618, %v1184, 0
    %1205 = vmatpush.msra.mxu0 0.0
    %1206 = vmatpush.msra.mxu0 0.0
    %1207 = vmatpush.msra.mxu0 0.0
    %1208 = vmatpush.msra.mxu0 0.0
    %1209 = vmatpush.msra.mxu0 0.0
    %1210 = vmatpush.msra.mxu0 0.0
    %1211 = vmatpush.msra.mxu0 0.0
    %1212 = vmatpush.msra.mxu0 0.0
    %1213 = vmatpush.msra.mxu0 %v1193
    %1214 = vmatpush.msra.mxu0 %v1192
    %1215 = vmatpush.msra.mxu0 %v1191
    %1216 = vmatpush.msra.mxu0 %v1190
    %1217 = vmatpush.msra.mxu0 %v1189
    %1218 = vmatpush.msra.mxu0 %v1188
    %1219 = vmatpush.msra.mxu0 %v1187
    %1220 = vmatpush.msra.mxu0 %v1186
    %1221 = vmatmul.f32.gmra.mxu0 %v1200
    %v1222 = vpop.f32.mrf.mxu0
    %v1223 = vadd.f32 %v1197, %v1222
    %1224 = vmatmul.f32.gmra.mxu0 %v1203
    %v1225 = vpop.f32.mrf.mxu0
    %v1226 = vadd.f32 %v1197, %v1225
    %1227 = vdwg.mxu0
    %v1228 = vadd.f32 %v1223, %v1126
    %v1229 = vadd.f32 %v1226, %v1127
    %s1230 = scalar_lea.vmem %s14, 1
    %v1231 = vld [vmem:[%s1230] sm:$0x1]
    %s1232 = scalar_lea.vmem %s15, 1
    %v1233 = vld [vmem:[%s1232] sm:$0x1]
    %v1234 = vsel %vm70, %v1228, 0.0
    %1235 = vadd.xlane.f32.xlu0 %v1234
    %v1236 = vpop.xlane.xlu0 %1235
    %v1237 = vsel %vm70, %v1229, 0.0
    %1238 = vadd.xlane.f32.xlu0 %v1237
    %v1239 = vpop.xlane.xlu0 %1238
    %v1240 = vmul.f32 %v1236, %v83
    %v1241 = vmul.f32 %v1239, %v83
    %v1242 = vsub.f32 %v1228, %v1240
    %v1243 = vsub.f32 %v1229, %v1241
    %v1244 = vmul.f32 %v1242, %v1242
    %v1245 = vmul.f32 %v1243, %v1243
    %v1246 = vsel %vm70, %v1244, 0.0
    %1247 = vadd.xlane.f32.xlu0 %v1246
    %v1248 = vpop.xlane.xlu0 %1247
    %v1249 = vsel %vm70, %v1245, 0.0
    %1250 = vadd.xlane.f32.xlu0 %v1249
    %v1251 = vpop.xlane.xlu0 %1250
    %v1252 = vmul.f32 %v1248, %v83
    %v1253 = vmul.f32 %v1251, %v83
    %v1254 = vadd.f32 %v1252, 1e-12
    %v1255 = vadd.f32 %v1253, 1e-12
    %v1256 = vrsqrt.pop %v1254
    %v1257 = vmul.f32 %v1256, %v1254
    %v1258 = vmul.f32 %v1257, %v1256
    %v1259 = vmul.f32 0.5, %v1258
    %v1260 = vsub.f32 1.5, %v1259
    %v1261 = vmul.f32 %v1256, %v1260
    %vm1262 = vweird.f32 %v1254
    %vm1263 = vweird.f32 %v1256
    %vm1264 = vmor %vm1262, %vm1263
    %v1265 = vsel %vm1264, %v1256, %v1261
    %v1266 = vrsqrt.pop %v1255
    %v1267 = vmul.f32 %v1266, %v1255
    %v1268 = vmul.f32 %v1267, %v1266
    %v1269 = vmul.f32 0.5, %v1268
    %v1270 = vsub.f32 1.5, %v1269
    %v1271 = vmul.f32 %v1266, %v1270
    %vm1272 = vweird.f32 %v1255
    %vm1273 = vweird.f32 %v1266
    %vm1274 = vmor %vm1272, %vm1273
    %v1275 = vsel %vm1274, %v1266, %v1271
    %v1276 = vmul.f32 %v1242, %v1265
    %v1277 = vmul.f32 %v1243, %v1275
    %v1279 = vperm.slane %v1231, 0
    %v1281 = vmul.f32 %v1276, %v1279
    %v1282 = vmul.f32 %v1277, %v1279
    %v1284 = vperm.slane %v1233, 0
    %v1286 = vadd.f32 %v1281, %v1284
    %v1287 = vadd.f32 %v1282, %v1284
    %v1288 = vld [vmem:[%s16] sm:$0xff]
    %v1289 = vld [vmem:[%s16 + $0x8] sm:$0xff]
    %v1290 = vld [vmem:[%s16 + $0x10] sm:$0xff]
    %v1291 = vld [vmem:[%s16 + $0x18] sm:$0xff]
    %v1292 = vld [vmem:[%s17] sm:$0x1]
    %v1294 = vperm.slane %v1292, 0
    %v1297 = vsel %vm70, %v1286, 0
    %v1300 = vsel %vm70, %v1287, 0
    %1302 = vmatpush.msra.mxu0 0.0
    %1303 = vmatpush.msra.mxu0 0.0
    %1304 = vmatpush.msra.mxu0 0.0
    %1305 = vmatpush.msra.mxu0 0.0
    %1306 = vmatpush.msra.mxu0 0.0
    %1307 = vmatpush.msra.mxu0 0.0
    %1308 = vmatpush.msra.mxu0 0.0
    %1309 = vmatpush.msra.mxu0 0.0
    %1310 = vmatpush.msra.mxu0 0.0
    %1311 = vmatpush.msra.mxu0 0.0
    %1312 = vmatpush.msra.mxu0 0.0
    %1313 = vmatpush.msra.mxu0 0.0
    %1314 = vmatpush.msra.mxu0 %v1291
    %1315 = vmatpush.msra.mxu0 %v1290
    %1316 = vmatpush.msra.mxu0 %v1289
    %1317 = vmatpush.msra.mxu0 %v1288
    %1318 = vmatmul.f32.gmra.mxu0 %v1297
    %v1319 = vpop.f32.mrf.mxu0
    %v1320 = vadd.f32 %v1294, %v1319
    %1321 = vmatmul.f32.gmra.mxu0 %v1300
    %v1322 = vpop.f32.mrf.mxu0
    %v1323 = vadd.f32 %v1294, %v1322
    %1324 = vdwg.mxu0
    %v1325 = vtanh.pop %v1320
    %v1326 = vtanh.pop %v1323
    %v1327 = vld [vmem:[%s18] sm:$0xff]
    %v1328 = vld [vmem:[%s18 + $0x8] sm:$0xff]
    %v1329 = vld [vmem:[%s18 + $0x10] sm:$0xff]
    %v1330 = vld [vmem:[%s18 + $0x18] sm:$0xff]
    %v1331 = vld [vmem:[%s19] sm:$0x1]
    %v1333 = vperm.slane %v1331, 0
    %v1336 = vsel %vm70, %v1325, 0
    %v1339 = vsel %vm70, %v1326, 0
    %1341 = vmatpush.msra.mxu0 0.0
    %1342 = vmatpush.msra.mxu0 0.0
    %1343 = vmatpush.msra.mxu0 0.0
    %1344 = vmatpush.msra.mxu0 0.0
    %1345 = vmatpush.msra.mxu0 0.0
    %1346 = vmatpush.msra.mxu0 0.0
    %1347 = vmatpush.msra.mxu0 0.0
    %1348 = vmatpush.msra.mxu0 0.0
    %1349 = vmatpush.msra.mxu0 0.0
    %1350 = vmatpush.msra.mxu0 0.0
    %1351 = vmatpush.msra.mxu0 0.0
    %1352 = vmatpush.msra.mxu0 0.0
    %1353 = vmatpush.msra.mxu0 %v1330
    %1354 = vmatpush.msra.mxu0 %v1329
    %1355 = vmatpush.msra.mxu0 %v1328
    %1356 = vmatpush.msra.mxu0 %v1327
    %1357 = vmatmul.f32.gmra.mxu0 %v1336
    %v1358 = vpop.f32.mrf.mxu0
    %v1359 = vadd.f32 %v1333, %v1358
    %1360 = vmatmul.f32.gmra.mxu0 %v1339
    %v1361 = vpop.f32.mrf.mxu0
    %v1362 = vadd.f32 %v1333, %v1361
    %1363 = vdwg.mxu0
    %vm1364 = vcmask 8192
    %1365 = vst.msk [vmem:[#allocation3] sm:$0x1] %vm1364, %v1359
    %1366 = vst.msk [vmem:[#allocation3 + $0x1] sm:$0x1] %vm1364, %v1362
    // Predicated region
    $region82: #{forward.1} parent=1 // pred_check
      _
    $region83: #{forward.1} parent=1 // pred_check_branch
      %1368 = sbr.rel (0) target = $region85
    $region84: #{forward.1} parent=1 // pred_region
      %1370 = vsyncadd [#allocation4], 0
      %s1372 = sshll.u32 [#allocation3], 4
      %s1373 = int_to_ptr.vmem [resolvable:$true] %s1372
      %s1374 = sshll.u32 %s20, 4
      %s1375 = int_to_ptr.hbm [resolvable:$true] %s1374
      %1377 = dma.vmem_to_hbm [thread:$0]  %s1373, 32, %s1375, [#allocation4]
    $region85: #{forward.1} parent=1 // pred_fallthru
      _
    // Predicated region
    $region86: #{forward.1} parent=1 // pred_check
      _
    $region87: #{forward.1} parent=1 // pred_check_branch
      %1379 = sbr.rel (0) target = $region89
    $region88: #{forward.1} parent=1 // pred_region
      %1381 = dma.done [#allocation4], 32
    $region89: #{forward.1} parent=1 // pred_fallthru
      _
    %1382 = vsyncpa [#allocation4], 1

</llo_original>
